<compile_context>
chip_gen: v6e
topology: v6e:2x2x1
jax: 0.10.0
libtpu: 0.0.40
codegen_flags: <defaults>
</compile_context>

<pallas_src>
import math

import jax
import jax.numpy as jnp
from jax import lax
from jax.experimental import pallas as pl
from jax.experimental.pallas import tpu as pltpu


def gat_prep_kernel(x_ref, w_ref, a1_ref, a2_ref, wh_ref, w1_ref, w2_ref):
    # Wh = x @ W  (f32 accumulate on the MXU; stored bf16 for the aggregation matmul)
    wh = jnp.dot(x_ref[...], w_ref[...], preferred_element_type=jnp.float32)   # (N, Fp)
    wh_ref[...] = wh.astype(wh_ref.dtype)
    # w1[i] = sum_k Wh[i,k] * a1[k]  -> VPU multiply + lane reduce (keeps the MXU free
    # instead of a 1-wide MXU output).
    w1_ref[...] = jnp.sum(wh * a1_ref[...], axis=-1, keepdims=True)            # (N, 1)
    # w2 produced directly as a lane-dense (1, N) row: (1, Fp) contracted with (N, Fp)
    # on the feature axis -- avoids materializing (N, 1) and transposing (XLU vxpose).
    w2_ref[...] = lax.dot_general(
        a2_ref[...], wh, (((1,), (1,)), ((), ())),
        preferred_element_type=jnp.float32)                                    # (1, N)


def gat_attn_kernel(adj_ref, w1_ref, w2_ref, wh_ref, b_ref, out_ref):
    # attention logits for this row block: e[i, j] = leaky_relu(w1[i] + w2[j])
    e = w1_ref[...] + w2_ref[...]                               # (TQ,1)+(1,N) -> (TQ, N)
    e = jnp.where(e > 0, e, 0.2 * e)                            # LeakyReLU(negative_slope=0.2)
    # masked attention: keep e where adj > 0, else the module's constant 9e-05
    att = jnp.where(adj_ref[...] != 0, e, jnp.full_like(e, 9e-05))
    # TODO(synk): torch F.dropout(p=0.2, training=True) is stochastic; identity (inference) here.
    # row-wise softmax (numerically stable); approx reciprocal runs on the EUP slot for free
    att = att - jnp.max(att, axis=-1, keepdims=True)
    p = jnp.exp(att)
    inv = pl.reciprocal(jnp.sum(p, axis=-1, keepdims=True), approx=True)
    probs = (p * inv).astype(jnp.bfloat16)
    # aggregation: bf16 x bf16 -> f32 accumulate on the MXU, then bias broadcast
    out = jnp.dot(probs, wh_ref[...], preferred_element_type=jnp.float32)      # (TQ, Fp)
    out_ref[...] = out + b_ref[...]


def _pick_row_tile(n, f_pad, vmem_budget_bytes=24 * 1024 * 1024, max_tq=512):
    """Largest row tile TQ (multiple of 32, divides N) whose working set fits the budget.

    Budget is kept below the default scoped-VMEM limit so the same sizing is safe on
    v5e/v6e (128 MiB physical) and on v7x (64 MiB physical / 32 MiB default scoped).
    """
    tq = min(n, max_tq)
    tq -= tq % 32                                   # int8 adj tiles pack (32, 128)
    while tq > 32:
        if n % tq == 0:
            resident = n * f_pad * 2 + n * 4 + f_pad * 4            # Wh(bf16) + w2 + bias
            per_step = 2 * (tq * n + tq * 4 + tq * f_pad * 4)       # dbl-buffered adj/w1/out
            temps = 3 * tq * n * 4                                  # live f32 (TQ,N) temporaries
            if resident + per_step + temps <= vmem_budget_bytes:
                return tq
        tq -= 32
    return 32


def gat_forward(x, adj, weights, alpha, bias):
    n, f_in = x.shape
    f_out = weights.shape[1]
    assert n % 32 == 0, "number of nodes must be a multiple of 32 for this kernel"
    f_pad = ((f_out + 127) // 128) * 128            # lane-dense output width

    f32 = jnp.float32
    # Pad the F_out axis up to a multiple of 128 (lane axis). Padded columns are exact
    # zeros end-to-end, so results are identical after slicing.
    w_p = jnp.zeros((f_in, f_pad), f32).at[:, :f_out].set(weights.astype(f32))
    a1_row = jnp.zeros((1, f_pad), f32).at[0, :f_out].set(alpha[:f_out, 0].astype(f32))
    a2_row = jnp.zeros((1, f_pad), f32).at[0, :f_out].set(alpha[f_out:, 0].astype(f32))
    b_row = jnp.zeros((1, f_pad), f32).at[0, :f_out].set(bias.astype(f32))
    # Adjacency as an int8 mask: 4x less HBM traffic / VMEM footprint than f32 for the
    # only O(N^2) input.
    adj_i8 = (adj > 0).astype(jnp.int8)

    vmem = pl.BlockSpec(memory_space=pltpu.MemorySpace.VMEM)

    # --- pass 1: Wh and the two attention-logit halves (everything is tiny) ---
    wh, w1, w2 = pl.pallas_call(
        gat_prep_kernel,
        out_shape=(
            jax.ShapeDtypeStruct((n, f_pad), jnp.bfloat16),
            jax.ShapeDtypeStruct((n, 1), f32),
            jax.ShapeDtypeStruct((1, n), f32),
        ),
        in_specs=[vmem] * 4,
        out_specs=(vmem, vmem, vmem),
    )(x.astype(f32), w_p, a1_row, a2_row)

    # --- pass 2: row-block tiled attention + aggregation ---
    tq = _pick_row_tile(n, f_pad)
    out_p = pl.pallas_call(
        gat_attn_kernel,
        out_shape=jax.ShapeDtypeStruct((n, f_pad), f32),
        grid_spec=pltpu.PrefetchScalarGridSpec(
            num_scalar_prefetch=0,
            grid=(n // tq,),
            in_specs=[
                pl.BlockSpec((tq, n), lambda i: (i, 0)),      # adj rows (streamed, int8)
                pl.BlockSpec((tq, 1), lambda i: (i, 0)),      # w1 rows (streamed)
                pl.BlockSpec((1, n), lambda i: (0, 0)),       # w2 row (resident)
                pl.BlockSpec((n, f_pad), lambda i: (0, 0)),   # Wh (resident, bf16)
                pl.BlockSpec((1, f_pad), lambda i: (0, 0)),   # bias (resident)
            ],
            out_specs=pl.BlockSpec((tq, f_pad), lambda i: (i, 0)),
        ),
        compiler_params=pltpu.CompilerParams(
            dimension_semantics=("parallel",),   # independent row blocks -> megacore on v7x
        ),
    )(adj_i8, w1, w2, wh, b_row)

    return out_p[:, :f_out]


def xavier_uniform(key, shape, gain):
    fan_in, fan_out = shape[0], shape[1]
    bound = gain * math.sqrt(6.0 / (fan_in + fan_out))
    return jax.random.uniform(key, shape, jnp.float32, -bound, bound)


if __name__ == "__main__":
    # Small shapes consistent with the module's forward: x (N, in_features), adj (N, N).
    N, F_IN, F_OUT = 1024, 32, 32

    key = jax.random.PRNGKey(0)
    kx, kadj, kw, ka, kb = jax.random.split(key, 5)

    x = jax.random.normal(kx, (N, F_IN), jnp.float32)
    adj = (jax.random.uniform(kadj, (N, N)) > 0.5).astype(jnp.float32)

    # Deterministic parameter init mirroring reset_parameters (xavier_uniform, gain=1.44)
    weights = xavier_uniform(kw, (F_IN, F_OUT), gain=1.44)
    alpha = xavier_uniform(ka, (2 * F_OUT, 1), gain=1.44)
    bias = jax.random.normal(kb, (F_OUT,), jnp.float32) * 0.01

    out = gat_forward(x, adj, weights, alpha, bias)
    jax.block_until_ready(out)

    # Pure-JAX f32 reference of the module semantics. The kernel uses bf16 operands for
    # the att @ Wh aggregation and an approximate softmax reciprocal, hence the relaxed
    # tolerance (bf16 rounding ~0.4% relative).
    Wh = x @ weights
    w1 = Wh @ alpha[:F_OUT, :]
    w2 = Wh @ alpha[F_OUT:, :]
    e = w1 + w2.T
    e = jnp.where(e > 0, e, 0.2 * e)
    att = jnp.where(adj > 0, e, 9e-05)
    att = jax.nn.softmax(att, axis=-1)
    ref = att @ Wh + bias[None, :]

    assert out.shape == ref.shape
    assert jnp.allclose(out, ref, atol=5e-2, rtol=5e-2), "mismatch vs reference"

    print("KERNEL_OK")
</pallas_src>

<mosaic_0001>
module attributes {stable_mosaic.version = 11 : i64} {
  func.func @gat_prep_kernel(%arg0: memref<1024x32xf32, #tpu.memory_space<vmem>>, %arg1: memref<32x128xf32, #tpu.memory_space<vmem>>, %arg2: memref<1x128xf32, #tpu.memory_space<vmem>>, %arg3: memref<1x128xf32, #tpu.memory_space<vmem>>, %arg4: memref<1024x128xbf16, #tpu.memory_space<vmem>>, %arg5: memref<1024x1xf32, #tpu.memory_space<vmem>>, %arg6: memref<1x1024xf32, #tpu.memory_space<vmem>>) attributes {dimension_semantics = [], scalar_prefetch = 0 : i64, scratch_operands = 0 : i64, tpu.core_type = #tpu.core_type<tc>} {
    %c0 = arith.constant 0 : index
    %c0_0 = arith.constant 0 : index
    %0 = vector.load %arg0[%c0, %c0_0] : memref<1024x32xf32, #tpu.memory_space<vmem>>, vector<1024x32xf32>
    %c0_1 = arith.constant 0 : index
    %c0_2 = arith.constant 0 : index
    %1 = vector.load %arg1[%c0_1, %c0_2] : memref<32x128xf32, #tpu.memory_space<vmem>>, vector<32x128xf32>
    %cst = arith.constant dense<0.000000e+00> : vector<1024x128xf32>
    %2 = tpu.matmul %0, %1, %cst {dimension_numbers = #tpu.dot_dimension_numbers<[1], [0], [0], [1], [0, 0, 1, 1], [], []>} : vector<1024x32xf32>, vector<32x128xf32>, vector<1024x128xf32> -> vector<1024x128xf32>
    %3 = arith.truncf %2 : vector<1024x128xf32> to vector<1024x128xbf16>
    %c0_3 = arith.constant 0 : index
    %c0_4 = arith.constant 0 : index
    %4 = vector.load %arg4[%c0_3, %c0_4] : memref<1024x128xbf16, #tpu.memory_space<vmem>>, vector<1024x128xbf16>
    tpu.vector_store %arg4[%c0_3, %c0_4], %3 {strides = array<i32>} : memref<1024x128xbf16, #tpu.memory_space<vmem>>, vector<1024x128xbf16>,
    %c0_5 = arith.constant 0 : index
    %c0_6 = arith.constant 0 : index
    %5 = vector.load %arg2[%c0_5, %c0_6] : memref<1x128xf32, #tpu.memory_space<vmem>>, vector<1x128xf32>
    %6 = vector.broadcast %5 : vector<1x128xf32> to vector<1024x128xf32>
    %7 = arith.mulf %2, %6 : vector<1024x128xf32>
    %cst_7 = arith.constant dense<0.000000e+00> : vector<1024xf32>
    %8 = vector.multi_reduction <add>, %7, %cst_7 [1] : vector<1024x128xf32> to vector<1024xf32>
    %9 = vector.shape_cast %8 : vector<1024xf32> to vector<1024x1xf32>
    %c0_8 = arith.constant 0 : index
    %c0_9 = arith.constant 0 : index
    %10 = vector.load %arg5[%c0_8, %c0_9] : memref<1024x1xf32, #tpu.memory_space<vmem>>, vector<1024x1xf32>
    tpu.vector_store %arg5[%c0_8, %c0_9], %9 {strides = array<i32>} : memref<1024x1xf32, #tpu.memory_space<vmem>>, vector<1024x1xf32>,
    %c0_10 = arith.constant 0 : index
    %c0_11 = arith.constant 0 : index
    %11 = vector.load %arg3[%c0_10, %c0_11] : memref<1x128xf32, #tpu.memory_space<vmem>>, vector<1x128xf32>
    %cst_12 = arith.constant dense<0.000000e+00> : vector<1x1024xf32>
    %12 = tpu.matmul %11, %2, %cst_12 {dimension_numbers = #tpu.dot_dimension_numbers<[1], [1], [0], [0], [0, 0, 1, 0], [], []>} : vector<1x128xf32>, vector<1024x128xf32>, vector<1x1024xf32> -> vector<1x1024xf32>
    %c0_13 = arith.constant 0 : index
    %c0_14 = arith.constant 0 : index
    %13 = vector.load %arg6[%c0_13, %c0_14] : memref<1x1024xf32, #tpu.memory_space<vmem>>, vector<1x1024xf32>
    tpu.vector_store %arg6[%c0_13, %c0_14], %12 {strides = array<i32>} : memref<1x1024xf32, #tpu.memory_space<vmem>>, vector<1x1024xf32>,
    return
  }
}

</mosaic_0001>

<llo_original>
// kernel: tpu_custom_call.1
$region0: #{tpu_custom_call.1}
  #allocation0 [shape = 'u32[]', space=smem, size = 0x4, offset = 0x4, fixed_abs, tag = 'smem constant byte address 0x4 - core index']
  #allocation1 [shape = 'u32[144,128]{1,0:T(1,128)}', space=vmem, size = 0x12000, scoped, tag = 'internal scratch']
  %s0 = inlined_call_operand.vmem [shape: f32[1024,32], index: 0, kind: input, shape index: {}]
  %s1 = inlined_call_operand.vmem [shape: f32[32,128], index: 1, kind: input, shape index: {}]
  %s2 = inlined_call_operand.vmem [shape: f32[1,128], index: 2, kind: input, shape index: {}]
  %s3 = inlined_call_operand.vmem [shape: f32[1,128], index: 3, kind: input, shape index: {}]
  %s4 = inlined_call_operand.hbm [shape: bf16[1024,128], index: 4, kind: output, shape index: {0}]
  %s5 = inlined_call_operand.vmem [shape: f32[1024,1], index: 5, kind: output, shape index: {1}]
  %s6 = inlined_call_operand.hbm [shape: f32[1,1024], index: 6, kind: output, shape index: {2}]
  %7 = xla_tuple %s4, %s5, %s6
  %s8 = sld [smem:[#allocation0]]
  $region42: #{tpu_custom_call.1} parent=0
    _
  %s10 = ssub.s32 1, %s8
  %s11 = scalar_select 0, %s10, %s8
  $region1: #{tpu_custom_call.1} parent=0
    #allocation2 [shape = 'u8[262144]{0}', space=vmem, size = 0x40000, scoped, tag = 'output window, operand 0, single buffered']
    #allocation3 [shape = 's32[1]{0}', space=sflag, size = 0x4, scoped, tag = 'scoped memory for tpu_custom_call.1']
    #allocation4 [shape = 'u8[4096]{0}', space=vmem, size = 0x1000, scoped, tag = 'output window, operand 2, single buffered']
    #allocation5 [shape = 's32[1]{0}', space=sflag, size = 0x4, scoped, tag = 'scoped memory for tpu_custom_call.1']
    %12 = vsyncpa [#allocation3], 0
    %13 = vsyncpa [#allocation5], 0
    // Predicated region
    $region2: #{tpu_custom_call.1} parent=1 // pred_check
      _
    $region3: #{tpu_custom_call.1} parent=1 // pred_check_branch
      %15 = sbr.rel (0) target = $region5
    $region4: #{tpu_custom_call.1} parent=1 // pred_region
      _
    $region5: #{tpu_custom_call.1} parent=1 // pred_fallthru
      _
    // Predicated region
    $region6: #{tpu_custom_call.1} parent=1 // pred_check
      _
    $region7: #{tpu_custom_call.1} parent=1 // pred_check_branch
      %17 = sbr.rel (0) target = $region9
    $region8: #{tpu_custom_call.1} parent=1 // pred_region
      _
    $region9: #{tpu_custom_call.1} parent=1 // pred_fallthru
      _
    // Predicated region
    $region10: #{tpu_custom_call.1} parent=1 // pred_check
      _
    $region11: #{tpu_custom_call.1} parent=1 // pred_check_branch
      %19 = sbr.rel (0) target = $region13
    $region12: #{tpu_custom_call.1} parent=1 // pred_region
      _
    $region13: #{tpu_custom_call.1} parent=1 // pred_fallthru
      _
    // Predicated region
    $region14: #{tpu_custom_call.1} parent=1 // pred_check
      _
    $region15: #{tpu_custom_call.1} parent=1 // pred_check_branch
      %21 = sbr.rel (0) target = $region17
    $region16: #{tpu_custom_call.1} parent=1 // pred_region
      _
    $region17: #{tpu_custom_call.1} parent=1 // pred_fallthru
      _
    %v22 = vld [vmem:[%s0] sm:$0xff]
    %v23 = vld [vmem:[%s0 + $0x8] sm:$0xff]
    %v24 = vld [vmem:[%s0 + $0x10] sm:$0xff]
    %v25 = vld [vmem:[%s0 + $0x18] sm:$0xff]
    %v26 = vld [vmem:[%s0 + $0x20] sm:$0xff]
    %v27 = vld [vmem:[%s0 + $0x28] sm:$0xff]
    %v28 = vld [vmem:[%s0 + $0x30] sm:$0xff]
    %v29 = vld [vmem:[%s0 + $0x38] sm:$0xff]
    %v30 = vld [vmem:[%s0 + $0x40] sm:$0xff]
    %v31 = vld [vmem:[%s0 + $0x48] sm:$0xff]
    %v32 = vld [vmem:[%s0 + $0x50] sm:$0xff]
    %v33 = vld [vmem:[%s0 + $0x58] sm:$0xff]
    %v34 = vld [vmem:[%s0 + $0x60] sm:$0xff]
    %v35 = vld [vmem:[%s0 + $0x68] sm:$0xff]
    %v36 = vld [vmem:[%s0 + $0x70] sm:$0xff]
    %v37 = vld [vmem:[%s0 + $0x78] sm:$0xff]
    %v38 = vld [vmem:[%s0 + $0x80] sm:$0xff]
    %v39 = vld [vmem:[%s0 + $0x88] sm:$0xff]
    %v40 = vld [vmem:[%s0 + $0x90] sm:$0xff]
    %v41 = vld [vmem:[%s0 + $0x98] sm:$0xff]
    %v42 = vld [vmem:[%s0 + $0xa0] sm:$0xff]
    %v43 = vld [vmem:[%s0 + $0xa8] sm:$0xff]
    %v44 = vld [vmem:[%s0 + $0xb0] sm:$0xff]
    %v45 = vld [vmem:[%s0 + $0xb8] sm:$0xff]
    %v46 = vld [vmem:[%s0 + $0xc0] sm:$0xff]
    %v47 = vld [vmem:[%s0 + $0xc8] sm:$0xff]
    %v48 = vld [vmem:[%s0 + $0xd0] sm:$0xff]
    %v49 = vld [vmem:[%s0 + $0xd8] sm:$0xff]
    %v50 = vld [vmem:[%s0 + $0xe0] sm:$0xff]
    %v51 = vld [vmem:[%s0 + $0xe8] sm:$0xff]
    %v52 = vld [vmem:[%s0 + $0xf0] sm:$0xff]
    %v53 = vld [vmem:[%s0 + $0xf8] sm:$0xff]
    %v54 = vld [vmem:[%s0 + $0x100] sm:$0xff]
    %v55 = vld [vmem:[%s0 + $0x108] sm:$0xff]
    %v56 = vld [vmem:[%s0 + $0x110] sm:$0xff]
    %v57 = vld [vmem:[%s0 + $0x118] sm:$0xff]
    %v58 = vld [vmem:[%s0 + $0x120] sm:$0xff]
    %v59 = vld [vmem:[%s0 + $0x128] sm:$0xff]
    %v60 = vld [vmem:[%s0 + $0x130] sm:$0xff]
    %v61 = vld [vmem:[%s0 + $0x138] sm:$0xff]
    %v62 = vld [vmem:[%s0 + $0x140] sm:$0xff]
    %v63 = vld [vmem:[%s0 + $0x148] sm:$0xff]
    %v64 = vld [vmem:[%s0 + $0x150] sm:$0xff]
    %v65 = vld [vmem:[%s0 + $0x158] sm:$0xff]
    %v66 = vld [vmem:[%s0 + $0x160] sm:$0xff]
    %v67 = vld [vmem:[%s0 + $0x168] sm:$0xff]
    %v68 = vld [vmem:[%s0 + $0x170] sm:$0xff]
    %v69 = vld [vmem:[%s0 + $0x178] sm:$0xff]
    %v70 = vld [vmem:[%s0 + $0x180] sm:$0xff]
    %v71 = vld [vmem:[%s0 + $0x188] sm:$0xff]
    %v72 = vld [vmem:[%s0 + $0x190] sm:$0xff]
    %v73 = vld [vmem:[%s0 + $0x198] sm:$0xff]
    %v74 = vld [vmem:[%s0 + $0x1a0] sm:$0xff]
    %v75 = vld [vmem:[%s0 + $0x1a8] sm:$0xff]
    %v76 = vld [vmem:[%s0 + $0x1b0] sm:$0xff]
    %v77 = vld [vmem:[%s0 + $0x1b8] sm:$0xff]
    %v78 = vld [vmem:[%s0 + $0x1c0] sm:$0xff]
    %v79 = vld [vmem:[%s0 + $0x1c8] sm:$0xff]
    %v80 = vld [vmem:[%s0 + $0x1d0] sm:$0xff]
    %v81 = vld [vmem:[%s0 + $0x1d8] sm:$0xff]
    %v82 = vld [vmem:[%s0 + $0x1e0] sm:$0xff]
    %v83 = vld [vmem:[%s0 + $0x1e8] sm:$0xff]
    %v84 = vld [vmem:[%s0 + $0x1f0] sm:$0xff]
    %v85 = vld [vmem:[%s0 + $0x1f8] sm:$0xff]
    %v86 = vld [vmem:[%s0 + $0x200] sm:$0xff]
    %v87 = vld [vmem:[%s0 + $0x208] sm:$0xff]
    %v88 = vld [vmem:[%s0 + $0x210] sm:$0xff]
    %v89 = vld [vmem:[%s0 + $0x218] sm:$0xff]
    %v90 = vld [vmem:[%s0 + $0x220] sm:$0xff]
    %v91 = vld [vmem:[%s0 + $0x228] sm:$0xff]
    %v92 = vld [vmem:[%s0 + $0x230] sm:$0xff]
    %v93 = vld [vmem:[%s0 + $0x238] sm:$0xff]
    %v94 = vld [vmem:[%s0 + $0x240] sm:$0xff]
    %v95 = vld [vmem:[%s0 + $0x248] sm:$0xff]
    %v96 = vld [vmem:[%s0 + $0x250] sm:$0xff]
    %v97 = vld [vmem:[%s0 + $0x258] sm:$0xff]
    %v98 = vld [vmem:[%s0 + $0x260] sm:$0xff]
    %v99 = vld [vmem:[%s0 + $0x268] sm:$0xff]
    %v100 = vld [vmem:[%s0 + $0x270] sm:$0xff]
    %v101 = vld [vmem:[%s0 + $0x278] sm:$0xff]
    %v102 = vld [vmem:[%s0 + $0x280] sm:$0xff]
    %v103 = vld [vmem:[%s0 + $0x288] sm:$0xff]
    %v104 = vld [vmem:[%s0 + $0x290] sm:$0xff]
    %v105 = vld [vmem:[%s0 + $0x298] sm:$0xff]
    %v106 = vld [vmem:[%s0 + $0x2a0] sm:$0xff]
    %v107 = vld [vmem:[%s0 + $0x2a8] sm:$0xff]
    %v108 = vld [vmem:[%s0 + $0x2b0] sm:$0xff]
    %v109 = vld [vmem:[%s0 + $0x2b8] sm:$0xff]
    %v110 = vld [vmem:[%s0 + $0x2c0] sm:$0xff]
    %v111 = vld [vmem:[%s0 + $0x2c8] sm:$0xff]
    %v112 = vld [vmem:[%s0 + $0x2d0] sm:$0xff]
    %v113 = vld [vmem:[%s0 + $0x2d8] sm:$0xff]
    %v114 = vld [vmem:[%s0 + $0x2e0] sm:$0xff]
    %v115 = vld [vmem:[%s0 + $0x2e8] sm:$0xff]
    %v116 = vld [vmem:[%s0 + $0x2f0] sm:$0xff]
    %v117 = vld [vmem:[%s0 + $0x2f8] sm:$0xff]
    %v118 = vld [vmem:[%s0 + $0x300] sm:$0xff]
    %v119 = vld [vmem:[%s0 + $0x308] sm:$0xff]
    %v120 = vld [vmem:[%s0 + $0x310] sm:$0xff]
    %v121 = vld [vmem:[%s0 + $0x318] sm:$0xff]
    %v122 = vld [vmem:[%s0 + $0x320] sm:$0xff]
    %v123 = vld [vmem:[%s0 + $0x328] sm:$0xff]
    %v124 = vld [vmem:[%s0 + $0x330] sm:$0xff]
    %v125 = vld [vmem:[%s0 + $0x338] sm:$0xff]
    %v126 = vld [vmem:[%s0 + $0x340] sm:$0xff]
    %v127 = vld [vmem:[%s0 + $0x348] sm:$0xff]
    %v128 = vld [vmem:[%s0 + $0x350] sm:$0xff]
    %v129 = vld [vmem:[%s0 + $0x358] sm:$0xff]
    %v130 = vld [vmem:[%s0 + $0x360] sm:$0xff]
    %v131 = vld [vmem:[%s0 + $0x368] sm:$0xff]
    %v132 = vld [vmem:[%s0 + $0x370] sm:$0xff]
    %v133 = vld [vmem:[%s0 + $0x378] sm:$0xff]
    %v134 = vld [vmem:[%s0 + $0x380] sm:$0xff]
    %v135 = vld [vmem:[%s0 + $0x388] sm:$0xff]
    %v136 = vld [vmem:[%s0 + $0x390] sm:$0xff]
    %v137 = vld [vmem:[%s0 + $0x398] sm:$0xff]
    %v138 = vld [vmem:[%s0 + $0x3a0] sm:$0xff]
    %v139 = vld [vmem:[%s0 + $0x3a8] sm:$0xff]
    %v140 = vld [vmem:[%s0 + $0x3b0] sm:$0xff]
    %v141 = vld [vmem:[%s0 + $0x3b8] sm:$0xff]
    %v142 = vld [vmem:[%s0 + $0x3c0] sm:$0xff]
    %v143 = vld [vmem:[%s0 + $0x3c8] sm:$0xff]
    %v144 = vld [vmem:[%s0 + $0x3d0] sm:$0xff]
    %v145 = vld [vmem:[%s0 + $0x3d8] sm:$0xff]
    %v146 = vld [vmem:[%s0 + $0x3e0] sm:$0xff]
    %v147 = vld [vmem:[%s0 + $0x3e8] sm:$0xff]
    %v148 = vld [vmem:[%s0 + $0x3f0] sm:$0xff]
    %v149 = vld [vmem:[%s0 + $0x3f8] sm:$0xff]
    %v150 = vld [vmem:[%s1] sm:$0xff]
    %v151 = vld [vmem:[%s1 + $0x8] sm:$0xff]
    %v152 = vld [vmem:[%s1 + $0x10] sm:$0xff]
    %v153 = vld [vmem:[%s1 + $0x18] sm:$0xff]
    %vm154 = vcmask 261120
    %v156 = vsel %vm154, %v22, 0
    %v159 = vsel %vm154, %v23, 0
    %v162 = vsel %vm154, %v24, 0
    %v165 = vsel %vm154, %v25, 0
    %v168 = vsel %vm154, %v26, 0
    %v171 = vsel %vm154, %v27, 0
    %v174 = vsel %vm154, %v28, 0
    %v177 = vsel %vm154, %v29, 0
    %v180 = vsel %vm154, %v30, 0
    %v183 = vsel %vm154, %v31, 0
    %v186 = vsel %vm154, %v32, 0
    %v189 = vsel %vm154, %v33, 0
    %v192 = vsel %vm154, %v34, 0
    %v195 = vsel %vm154, %v35, 0
    %v198 = vsel %vm154, %v36, 0
    %v201 = vsel %vm154, %v37, 0
    %v204 = vsel %vm154, %v38, 0
    %v207 = vsel %vm154, %v39, 0
    %v210 = vsel %vm154, %v40, 0
    %v213 = vsel %vm154, %v41, 0
    %v216 = vsel %vm154, %v42, 0
    %v219 = vsel %vm154, %v43, 0
    %v222 = vsel %vm154, %v44, 0
    %v225 = vsel %vm154, %v45, 0
    %v228 = vsel %vm154, %v46, 0
    %v231 = vsel %vm154, %v47, 0
    %v234 = vsel %vm154, %v48, 0
    %v237 = vsel %vm154, %v49, 0
    %v240 = vsel %vm154, %v50, 0
    %v243 = vsel %vm154, %v51, 0
    %v246 = vsel %vm154, %v52, 0
    %v249 = vsel %vm154, %v53, 0
    %v252 = vsel %vm154, %v54, 0
    %v255 = vsel %vm154, %v55, 0
    %v258 = vsel %vm154, %v56, 0
    %v261 = vsel %vm154, %v57, 0
    %v264 = vsel %vm154, %v58, 0
    %v267 = vsel %vm154, %v59, 0
    %v270 = vsel %vm154, %v60, 0
    %v273 = vsel %vm154, %v61, 0
    %v276 = vsel %vm154, %v62, 0
    %v279 = vsel %vm154, %v63, 0
    %v282 = vsel %vm154, %v64, 0
    %v285 = vsel %vm154, %v65, 0
    %v288 = vsel %vm154, %v66, 0
    %v291 = vsel %vm154, %v67, 0
    %v294 = vsel %vm154, %v68, 0
    %v297 = vsel %vm154, %v69, 0
    %v300 = vsel %vm154, %v70, 0
    %v303 = vsel %vm154, %v71, 0
    %v306 = vsel %vm154, %v72, 0
    %v309 = vsel %vm154, %v73, 0
    %v312 = vsel %vm154, %v74, 0
    %v315 = vsel %vm154, %v75, 0
    %v318 = vsel %vm154, %v76, 0
    %v321 = vsel %vm154, %v77, 0
    %v324 = vsel %vm154, %v78, 0
    %v327 = vsel %vm154, %v79, 0
    %v330 = vsel %vm154, %v80, 0
    %v333 = vsel %vm154, %v81, 0
    %v336 = vsel %vm154, %v82, 0
    %v339 = vsel %vm154, %v83, 0
    %v342 = vsel %vm154, %v84, 0
    %v345 = vsel %vm154, %v85, 0
    %v348 = vsel %vm154, %v86, 0
    %v351 = vsel %vm154, %v87, 0
    %v354 = vsel %vm154, %v88, 0
    %v357 = vsel %vm154, %v89, 0
    %v360 = vsel %vm154, %v90, 0
    %v363 = vsel %vm154, %v91, 0
    %v366 = vsel %vm154, %v92, 0
    %v369 = vsel %vm154, %v93, 0
    %v372 = vsel %vm154, %v94, 0
    %v375 = vsel %vm154, %v95, 0
    %v378 = vsel %vm154, %v96, 0
    %v381 = vsel %vm154, %v97, 0
    %v384 = vsel %vm154, %v98, 0
    %v387 = vsel %vm154, %v99, 0
    %v390 = vsel %vm154, %v100, 0
    %v393 = vsel %vm154, %v101, 0
    %v396 = vsel %vm154, %v102, 0
    %v399 = vsel %vm154, %v103, 0
    %v402 = vsel %vm154, %v104, 0
    %v405 = vsel %vm154, %v105, 0
    %v408 = vsel %vm154, %v106, 0
    %v411 = vsel %vm154, %v107, 0
    %v414 = vsel %vm154, %v108, 0
    %v417 = vsel %vm154, %v109, 0
    %v420 = vsel %vm154, %v110, 0
    %v423 = vsel %vm154, %v111, 0
    %v426 = vsel %vm154, %v112, 0
    %v429 = vsel %vm154, %v113, 0
    %v432 = vsel %vm154, %v114, 0
    %v435 = vsel %vm154, %v115, 0
    %v438 = vsel %vm154, %v116, 0
    %v441 = vsel %vm154, %v117, 0
    %v444 = vsel %vm154, %v118, 0
    %v447 = vsel %vm154, %v119, 0
    %v450 = vsel %vm154, %v120, 0
    %v453 = vsel %vm154, %v121, 0
    %v456 = vsel %vm154, %v122, 0
    %v459 = vsel %vm154, %v123, 0
    %v462 = vsel %vm154, %v124, 0
    %v465 = vsel %vm154, %v125, 0
    %v468 = vsel %vm154, %v126, 0
    %v471 = vsel %vm154, %v127, 0
    %v474 = vsel %vm154, %v128, 0
    %v477 = vsel %vm154, %v129, 0
    %v480 = vsel %vm154, %v130, 0
    %v483 = vsel %vm154, %v131, 0
    %v486 = vsel %vm154, %v132, 0
    %v489 = vsel %vm154, %v133, 0
    %v492 = vsel %vm154, %v134, 0
    %v495 = vsel %vm154, %v135, 0
    %v498 = vsel %vm154, %v136, 0
    %v501 = vsel %vm154, %v137, 0
    %v504 = vsel %vm154, %v138, 0
    %v507 = vsel %vm154, %v139, 0
    %v510 = vsel %vm154, %v140, 0
    %v513 = vsel %vm154, %v141, 0
    %v516 = vsel %vm154, %v142, 0
    %v519 = vsel %vm154, %v143, 0
    %v522 = vsel %vm154, %v144, 0
    %v525 = vsel %vm154, %v145, 0
    %v528 = vsel %vm154, %v146, 0
    %v531 = vsel %vm154, %v147, 0
    %v534 = vsel %vm154, %v148, 0
    %v537 = vsel %vm154, %v149, 0
    %539 = vmatprep.subr.mxu0 0.0
    %540 = vmatpush1.msra.mxu0 0.0
    %541 = vmatprep.subr.mxu0 0.0
    %542 = vmatpush1.msra.mxu0 0.0
    %543 = vmatprep.subr.mxu0 0.0
    %544 = vmatpush1.msra.mxu0 0.0
    %545 = vmatprep.subr.mxu0 0.0
    %546 = vmatpush1.msra.mxu0 0.0
    %547 = vmatprep.subr.mxu0 0.0
    %548 = vmatpush1.msra.mxu0 0.0
    %549 = vmatprep.subr.mxu0 0.0
    %550 = vmatpush1.msra.mxu0 0.0
    %551 = vmatprep.subr.mxu0 0.0
    %552 = vmatpush1.msra.mxu0 0.0
    %553 = vmatprep.subr.mxu0 0.0
    %554 = vmatpush1.msra.mxu0 0.0
    %555 = vmatprep.subr.mxu0 0.0
    %556 = vmatpush1.msra.mxu0 0.0
    %557 = vmatprep.subr.mxu0 0.0
    %558 = vmatpush1.msra.mxu0 0.0
    %559 = vmatprep.subr.mxu0 0.0
    %560 = vmatpush1.msra.mxu0 0.0
    %561 = vmatprep.subr.mxu0 0.0
    %562 = vmatpush1.msra.mxu0 0.0
    %563 = vmatprep.subr.mxu0 0.0
    %564 = vmatpush1.msra.mxu0 %v153
    %565 = vmatprep.subr.mxu0 0.0
    %566 = vmatpush1.msra.mxu0 %v152
    %567 = vmatprep.subr.mxu0 0.0
    %568 = vmatpush1.msra.mxu0 %v151
    %569 = vmatprep.subr.mxu0 0.0
    %570 = vmatpush1.msra.mxu0 %v150
    %571 = vmatprep.subr.mxu0 0.0
    %572 = vmatpush2.msra.mxu0 0.0
    %573 = vmatprep.subr.mxu0 0.0
    %574 = vmatpush2.msra.mxu0 0.0
    %575 = vmatprep.subr.mxu0 0.0
    %576 = vmatpush2.msra.mxu0 0.0
    %577 = vmatprep.subr.mxu0 0.0
    %578 = vmatpush2.msra.mxu0 0.0
    %579 = vmatprep.subr.mxu0 0.0
    %580 = vmatpush2.msra.mxu0 0.0
    %581 = vmatprep.subr.mxu0 0.0
    %582 = vmatpush2.msra.mxu0 0.0
    %583 = vmatprep.subr.mxu0 0.0
    %584 = vmatpush2.msra.mxu0 0.0
    %585 = vmatprep.subr.mxu0 0.0
    %586 = vmatpush2.msra.mxu0 0.0
    %587 = vmatprep.subr.mxu0 0.0
    %588 = vmatpush2.msra.mxu0 0.0
    %589 = vmatprep.subr.mxu0 0.0
    %590 = vmatpush2.msra.mxu0 0.0
    %591 = vmatprep.subr.mxu0 0.0
    %592 = vmatpush2.msra.mxu0 0.0
    %593 = vmatprep.subr.mxu0 0.0
    %594 = vmatpush2.msra.mxu0 0.0
    %595 = vmatprep.subr.mxu0 0.0
    %596 = vmatpush2.msra.mxu0 0.0
    %597 = vmatprep.subr.mxu0 0.0
    %598 = vmatpush2.msra.mxu0 0.0
    %599 = vmatprep.subr.mxu0 0.0
    %600 = vmatpush2.msra.mxu0 0.0
    %601 = vmatprep.subr.mxu0 0.0
    %602 = vmatpush2.msra.mxu0 0.0
    %603 = vmatprep.mubr.f32.mxu0 0.0
    %604 = vmatmul.mubr.f32.gmra.mxu0 %v156
    %v605 = vpop.f32.mrf.mxu0
    %v606 = vadd.f32 0.0, %v605
    %v607 = vpop.f32.mrf.mxu0
    %608 = vmatprep.mubr.f32.mxu0 0.0
    %609 = vmatmul.mubr.f32.gmra.mxu0 %v159
    %v610 = vpop.f32.mrf.mxu0
    %v611 = vadd.f32 0.0, %v610
    %v612 = vpop.f32.mrf.mxu0
    %613 = vmatprep.mubr.f32.mxu0 0.0
    %614 = vmatmul.mubr.f32.gmra.mxu0 %v162
    %v615 = vpop.f32.mrf.mxu0
    %v616 = vadd.f32 0.0, %v615
    %v617 = vpop.f32.mrf.mxu0
    %618 = vmatprep.mubr.f32.mxu0 0.0
    %619 = vmatmul.mubr.f32.gmra.mxu0 %v165
    %v620 = vpop.f32.mrf.mxu0
    %v621 = vadd.f32 0.0, %v620
    %v622 = vpop.f32.mrf.mxu0
    %623 = vmatprep.mubr.f32.mxu0 0.0
    %624 = vmatmul.mubr.f32.gmra.mxu0 %v168
    %v625 = vpop.f32.mrf.mxu0
    %v626 = vadd.f32 0.0, %v625
    %v627 = vpop.f32.mrf.mxu0
    %628 = vmatprep.mubr.f32.mxu0 0.0
    %629 = vmatmul.mubr.f32.gmra.mxu0 %v171
    %v630 = vpop.f32.mrf.mxu0
    %v631 = vadd.f32 0.0, %v630
    %v632 = vpop.f32.mrf.mxu0
    %633 = vmatprep.mubr.f32.mxu0 0.0
    %634 = vmatmul.mubr.f32.gmra.mxu0 %v174
    %v635 = vpop.f32.mrf.mxu0
    %v636 = vadd.f32 0.0, %v635
    %v637 = vpop.f32.mrf.mxu0
    %638 = vmatprep.mubr.f32.mxu0 0.0
    %639 = vmatmul.mubr.f32.gmra.mxu0 %v177
    %v640 = vpop.f32.mrf.mxu0
    %v641 = vadd.f32 0.0, %v640
    %v642 = vpop.f32.mrf.mxu0
    %643 = vmatprep.mubr.f32.mxu0 0.0
    %644 = vmatmul.mubr.f32.gmra.mxu0 %v180
    %v645 = vpop.f32.mrf.mxu0
    %v646 = vadd.f32 0.0, %v645
    %v647 = vpop.f32.mrf.mxu0
    %648 = vmatprep.mubr.f32.mxu0 0.0
    %649 = vmatmul.mubr.f32.gmra.mxu0 %v183
    %v650 = vpop.f32.mrf.mxu0
    %v651 = vadd.f32 0.0, %v650
    %v652 = vpop.f32.mrf.mxu0
    %653 = vmatprep.mubr.f32.mxu0 0.0
    %654 = vmatmul.mubr.f32.gmra.mxu0 %v186
    %v655 = vpop.f32.mrf.mxu0
    %v656 = vadd.f32 0.0, %v655
    %v657 = vpop.f32.mrf.mxu0
    %658 = vmatprep.mubr.f32.mxu0 0.0
    %659 = vmatmul.mubr.f32.gmra.mxu0 %v189
    %v660 = vpop.f32.mrf.mxu0
    %v661 = vadd.f32 0.0, %v660
    %v662 = vpop.f32.mrf.mxu0
    %663 = vmatprep.mubr.f32.mxu0 0.0
    %664 = vmatmul.mubr.f32.gmra.mxu0 %v192
    %v665 = vpop.f32.mrf.mxu0
    %v666 = vadd.f32 0.0, %v665
    %v667 = vpop.f32.mrf.mxu0
    %668 = vmatprep.mubr.f32.mxu0 0.0
    %669 = vmatmul.mubr.f32.gmra.mxu0 %v195
    %v670 = vpop.f32.mrf.mxu0
    %v671 = vadd.f32 0.0, %v670
    %v672 = vpop.f32.mrf.mxu0
    %673 = vmatprep.mubr.f32.mxu0 0.0
    %674 = vmatmul.mubr.f32.gmra.mxu0 %v198
    %v675 = vpop.f32.mrf.mxu0
    %v676 = vadd.f32 0.0, %v675
    %v677 = vpop.f32.mrf.mxu0
    %678 = vmatprep.mubr.f32.mxu0 0.0
    %679 = vmatmul.mubr.f32.gmra.mxu0 %v201
    %v680 = vpop.f32.mrf.mxu0
    %v681 = vadd.f32 0.0, %v680
    %v682 = vpop.f32.mrf.mxu0
    %683 = vmatprep.mubr.f32.mxu0 0.0
    %684 = vmatmul.mubr.f32.gmra.mxu0 %v204
    %v685 = vpop.f32.mrf.mxu0
    %v686 = vadd.f32 0.0, %v685
    %v687 = vpop.f32.mrf.mxu0
    %688 = vmatprep.mubr.f32.mxu0 0.0
    %689 = vmatmul.mubr.f32.gmra.mxu0 %v207
    %v690 = vpop.f32.mrf.mxu0
    %v691 = vadd.f32 0.0, %v690
    %v692 = vpop.f32.mrf.mxu0
    %693 = vmatprep.mubr.f32.mxu0 0.0
    %694 = vmatmul.mubr.f32.gmra.mxu0 %v210
    %v695 = vpop.f32.mrf.mxu0
    %v696 = vadd.f32 0.0, %v695
    %v697 = vpop.f32.mrf.mxu0
    %698 = vmatprep.mubr.f32.mxu0 0.0
    %699 = vmatmul.mubr.f32.gmra.mxu0 %v213
    %v700 = vpop.f32.mrf.mxu0
    %v701 = vadd.f32 0.0, %v700
    %v702 = vpop.f32.mrf.mxu0
    %703 = vmatprep.mubr.f32.mxu0 0.0
    %704 = vmatmul.mubr.f32.gmra.mxu0 %v216
    %v705 = vpop.f32.mrf.mxu0
    %v706 = vadd.f32 0.0, %v705
    %v707 = vpop.f32.mrf.mxu0
    %708 = vmatprep.mubr.f32.mxu0 0.0
    %709 = vmatmul.mubr.f32.gmra.mxu0 %v219
    %v710 = vpop.f32.mrf.mxu0
    %v711 = vadd.f32 0.0, %v710
    %v712 = vpop.f32.mrf.mxu0
    %713 = vmatprep.mubr.f32.mxu0 0.0
    %714 = vmatmul.mubr.f32.gmra.mxu0 %v222
    %v715 = vpop.f32.mrf.mxu0
    %v716 = vadd.f32 0.0, %v715
    %v717 = vpop.f32.mrf.mxu0
    %718 = vmatprep.mubr.f32.mxu0 0.0
    %719 = vmatmul.mubr.f32.gmra.mxu0 %v225
    %v720 = vpop.f32.mrf.mxu0
    %v721 = vadd.f32 0.0, %v720
    %v722 = vpop.f32.mrf.mxu0
    %723 = vmatprep.mubr.f32.mxu0 0.0
    %724 = vmatmul.mubr.f32.gmra.mxu0 %v228
    %v725 = vpop.f32.mrf.mxu0
    %v726 = vadd.f32 0.0, %v725
    %v727 = vpop.f32.mrf.mxu0
    %728 = vmatprep.mubr.f32.mxu0 0.0
    %729 = vmatmul.mubr.f32.gmra.mxu0 %v231
    %v730 = vpop.f32.mrf.mxu0
    %v731 = vadd.f32 0.0, %v730
    %v732 = vpop.f32.mrf.mxu0
    %733 = vmatprep.mubr.f32.mxu0 0.0
    %734 = vmatmul.mubr.f32.gmra.mxu0 %v234
    %v735 = vpop.f32.mrf.mxu0
    %v736 = vadd.f32 0.0, %v735
    %v737 = vpop.f32.mrf.mxu0
    %738 = vmatprep.mubr.f32.mxu0 0.0
    %739 = vmatmul.mubr.f32.gmra.mxu0 %v237
    %v740 = vpop.f32.mrf.mxu0
    %v741 = vadd.f32 0.0, %v740
    %v742 = vpop.f32.mrf.mxu0
    %743 = vmatprep.mubr.f32.mxu0 0.0
    %744 = vmatmul.mubr.f32.gmra.mxu0 %v240
    %v745 = vpop.f32.mrf.mxu0
    %v746 = vadd.f32 0.0, %v745
    %v747 = vpop.f32.mrf.mxu0
    %748 = vmatprep.mubr.f32.mxu0 0.0
    %749 = vmatmul.mubr.f32.gmra.mxu0 %v243
    %v750 = vpop.f32.mrf.mxu0
    %v751 = vadd.f32 0.0, %v750
    %v752 = vpop.f32.mrf.mxu0
    %753 = vmatprep.mubr.f32.mxu0 0.0
    %754 = vmatmul.mubr.f32.gmra.mxu0 %v246
    %v755 = vpop.f32.mrf.mxu0
    %v756 = vadd.f32 0.0, %v755
    %v757 = vpop.f32.mrf.mxu0
    %758 = vmatprep.mubr.f32.mxu0 0.0
    %759 = vmatmul.mubr.f32.gmra.mxu0 %v249
    %v760 = vpop.f32.mrf.mxu0
    %v761 = vadd.f32 0.0, %v760
    %v762 = vpop.f32.mrf.mxu0
    %763 = vmatprep.mubr.f32.mxu0 0.0
    %764 = vmatmul.mubr.f32.gmra.mxu0 %v252
    %v765 = vpop.f32.mrf.mxu0
    %v766 = vadd.f32 0.0, %v765
    %v767 = vpop.f32.mrf.mxu0
    %768 = vmatprep.mubr.f32.mxu0 0.0
    %769 = vmatmul.mubr.f32.gmra.mxu0 %v255
    %v770 = vpop.f32.mrf.mxu0
    %v771 = vadd.f32 0.0, %v770
    %v772 = vpop.f32.mrf.mxu0
    %773 = vmatprep.mubr.f32.mxu0 0.0
    %774 = vmatmul.mubr.f32.gmra.mxu0 %v258
    %v775 = vpop.f32.mrf.mxu0
    %v776 = vadd.f32 0.0, %v775
    %v777 = vpop.f32.mrf.mxu0
    %778 = vmatprep.mubr.f32.mxu0 0.0
    %779 = vmatmul.mubr.f32.gmra.mxu0 %v261
    %v780 = vpop.f32.mrf.mxu0
    %v781 = vadd.f32 0.0, %v780
    %v782 = vpop.f32.mrf.mxu0
    %783 = vmatprep.mubr.f32.mxu0 0.0
    %784 = vmatmul.mubr.f32.gmra.mxu0 %v264
    %v785 = vpop.f32.mrf.mxu0
    %v786 = vadd.f32 0.0, %v785
    %v787 = vpop.f32.mrf.mxu0
    %788 = vmatprep.mubr.f32.mxu0 0.0
    %789 = vmatmul.mubr.f32.gmra.mxu0 %v267
    %v790 = vpop.f32.mrf.mxu0
    %v791 = vadd.f32 0.0, %v790
    %v792 = vpop.f32.mrf.mxu0
    %793 = vmatprep.mubr.f32.mxu0 0.0
    %794 = vmatmul.mubr.f32.gmra.mxu0 %v270
    %v795 = vpop.f32.mrf.mxu0
    %v796 = vadd.f32 0.0, %v795
    %v797 = vpop.f32.mrf.mxu0
    %798 = vmatprep.mubr.f32.mxu0 0.0
    %799 = vmatmul.mubr.f32.gmra.mxu0 %v273
    %v800 = vpop.f32.mrf.mxu0
    %v801 = vadd.f32 0.0, %v800
    %v802 = vpop.f32.mrf.mxu0
    %803 = vmatprep.mubr.f32.mxu0 0.0
    %804 = vmatmul.mubr.f32.gmra.mxu0 %v276
    %v805 = vpop.f32.mrf.mxu0
    %v806 = vadd.f32 0.0, %v805
    %v807 = vpop.f32.mrf.mxu0
    %808 = vmatprep.mubr.f32.mxu0 0.0
    %809 = vmatmul.mubr.f32.gmra.mxu0 %v279
    %v810 = vpop.f32.mrf.mxu0
    %v811 = vadd.f32 0.0, %v810
    %v812 = vpop.f32.mrf.mxu0
    %813 = vmatprep.mubr.f32.mxu0 0.0
    %814 = vmatmul.mubr.f32.gmra.mxu0 %v282
    %v815 = vpop.f32.mrf.mxu0
    %v816 = vadd.f32 0.0, %v815
    %v817 = vpop.f32.mrf.mxu0
    %818 = vmatprep.mubr.f32.mxu0 0.0
    %819 = vmatmul.mubr.f32.gmra.mxu0 %v285
    %v820 = vpop.f32.mrf.mxu0
    %v821 = vadd.f32 0.0, %v820
    %v822 = vpop.f32.mrf.mxu0
    %823 = vmatprep.mubr.f32.mxu0 0.0
    %824 = vmatmul.mubr.f32.gmra.mxu0 %v288
    %v825 = vpop.f32.mrf.mxu0
    %v826 = vadd.f32 0.0, %v825
    %v827 = vpop.f32.mrf.mxu0
    %828 = vmatprep.mubr.f32.mxu0 0.0
    %829 = vmatmul.mubr.f32.gmra.mxu0 %v291
    %v830 = vpop.f32.mrf.mxu0
    %v831 = vadd.f32 0.0, %v830
    %v832 = vpop.f32.mrf.mxu0
    %833 = vmatprep.mubr.f32.mxu0 0.0
    %834 = vmatmul.mubr.f32.gmra.mxu0 %v294
    %v835 = vpop.f32.mrf.mxu0
    %v836 = vadd.f32 0.0, %v835
    %v837 = vpop.f32.mrf.mxu0
    %838 = vmatprep.mubr.f32.mxu0 0.0
    %839 = vmatmul.mubr.f32.gmra.mxu0 %v297
    %v840 = vpop.f32.mrf.mxu0
    %v841 = vadd.f32 0.0, %v840
    %v842 = vpop.f32.mrf.mxu0
    %843 = vmatprep.mubr.f32.mxu0 0.0
    %844 = vmatmul.mubr.f32.gmra.mxu0 %v300
    %v845 = vpop.f32.mrf.mxu0
    %v846 = vadd.f32 0.0, %v845
    %v847 = vpop.f32.mrf.mxu0
    %848 = vmatprep.mubr.f32.mxu0 0.0
    %849 = vmatmul.mubr.f32.gmra.mxu0 %v303
    %v850 = vpop.f32.mrf.mxu0
    %v851 = vadd.f32 0.0, %v850
    %v852 = vpop.f32.mrf.mxu0
    %853 = vmatprep.mubr.f32.mxu0 0.0
    %854 = vmatmul.mubr.f32.gmra.mxu0 %v306
    %v855 = vpop.f32.mrf.mxu0
    %v856 = vadd.f32 0.0, %v855
    %v857 = vpop.f32.mrf.mxu0
    %858 = vmatprep.mubr.f32.mxu0 0.0
    %859 = vmatmul.mubr.f32.gmra.mxu0 %v309
    %v860 = vpop.f32.mrf.mxu0
    %v861 = vadd.f32 0.0, %v860
    %v862 = vpop.f32.mrf.mxu0
    %863 = vmatprep.mubr.f32.mxu0 0.0
    %864 = vmatmul.mubr.f32.gmra.mxu0 %v312
    %v865 = vpop.f32.mrf.mxu0
    %v866 = vadd.f32 0.0, %v865
    %v867 = vpop.f32.mrf.mxu0
    %868 = vmatprep.mubr.f32.mxu0 0.0
    %869 = vmatmul.mubr.f32.gmra.mxu0 %v315
    %v870 = vpop.f32.mrf.mxu0
    %v871 = vadd.f32 0.0, %v870
    %v872 = vpop.f32.mrf.mxu0
    %873 = vmatprep.mubr.f32.mxu0 0.0
    %874 = vmatmul.mubr.f32.gmra.mxu0 %v318
    %v875 = vpop.f32.mrf.mxu0
    %v876 = vadd.f32 0.0, %v875
    %v877 = vpop.f32.mrf.mxu0
    %878 = vmatprep.mubr.f32.mxu0 0.0
    %879 = vmatmul.mubr.f32.gmra.mxu0 %v321
    %v880 = vpop.f32.mrf.mxu0
    %v881 = vadd.f32 0.0, %v880
    %v882 = vpop.f32.mrf.mxu0
    %883 = vmatprep.mubr.f32.mxu0 0.0
    %884 = vmatmul.mubr.f32.gmra.mxu0 %v324
    %v885 = vpop.f32.mrf.mxu0
    %v886 = vadd.f32 0.0, %v885
    %v887 = vpop.f32.mrf.mxu0
    %888 = vmatprep.mubr.f32.mxu0 0.0
    %889 = vmatmul.mubr.f32.gmra.mxu0 %v327
    %v890 = vpop.f32.mrf.mxu0
    %v891 = vadd.f32 0.0, %v890
    %v892 = vpop.f32.mrf.mxu0
    %893 = vmatprep.mubr.f32.mxu0 0.0
    %894 = vmatmul.mubr.f32.gmra.mxu0 %v330
    %v895 = vpop.f32.mrf.mxu0
    %v896 = vadd.f32 0.0, %v895
    %v897 = vpop.f32.mrf.mxu0
    %898 = vmatprep.mubr.f32.mxu0 0.0
    %899 = vmatmul.mubr.f32.gmra.mxu0 %v333
    %v900 = vpop.f32.mrf.mxu0
    %v901 = vadd.f32 0.0, %v900
    %v902 = vpop.f32.mrf.mxu0
    %903 = vmatprep.mubr.f32.mxu0 0.0
    %904 = vmatmul.mubr.f32.gmra.mxu0 %v336
    %v905 = vpop.f32.mrf.mxu0
    %v906 = vadd.f32 0.0, %v905
    %v907 = vpop.f32.mrf.mxu0
    %908 = vmatprep.mubr.f32.mxu0 0.0
    %909 = vmatmul.mubr.f32.gmra.mxu0 %v339
    %v910 = vpop.f32.mrf.mxu0
    %v911 = vadd.f32 0.0, %v910
    %v912 = vpop.f32.mrf.mxu0
    %913 = vmatprep.mubr.f32.mxu0 0.0
    %914 = vmatmul.mubr.f32.gmra.mxu0 %v342
    %v915 = vpop.f32.mrf.mxu0
    %v916 = vadd.f32 0.0, %v915
    %v917 = vpop.f32.mrf.mxu0
    %918 = vmatprep.mubr.f32.mxu0 0.0
    %919 = vmatmul.mubr.f32.gmra.mxu0 %v345
    %v920 = vpop.f32.mrf.mxu0
    %v921 = vadd.f32 0.0, %v920
    %v922 = vpop.f32.mrf.mxu0
    %923 = vmatprep.mubr.f32.mxu0 0.0
    %924 = vmatmul.mubr.f32.gmra.mxu0 %v348
    %v925 = vpop.f32.mrf.mxu0
    %v926 = vadd.f32 0.0, %v925
    %v927 = vpop.f32.mrf.mxu0
    %928 = vmatprep.mubr.f32.mxu0 0.0
    %929 = vmatmul.mubr.f32.gmra.mxu0 %v351
    %v930 = vpop.f32.mrf.mxu0
    %v931 = vadd.f32 0.0, %v930
    %v932 = vpop.f32.mrf.mxu0
    %933 = vmatprep.mubr.f32.mxu0 0.0
    %934 = vmatmul.mubr.f32.gmra.mxu0 %v354
    %v935 = vpop.f32.mrf.mxu0
    %v936 = vadd.f32 0.0, %v935
    %v937 = vpop.f32.mrf.mxu0
    %938 = vmatprep.mubr.f32.mxu0 0.0
    %939 = vmatmul.mubr.f32.gmra.mxu0 %v357
    %v940 = vpop.f32.mrf.mxu0
    %v941 = vadd.f32 0.0, %v940
    %v942 = vpop.f32.mrf.mxu0
    %943 = vmatprep.mubr.f32.mxu0 0.0
    %944 = vmatmul.mubr.f32.gmra.mxu0 %v360
    %v945 = vpop.f32.mrf.mxu0
    %v946 = vadd.f32 0.0, %v945
    %v947 = vpop.f32.mrf.mxu0
    %948 = vmatprep.mubr.f32.mxu0 0.0
    %949 = vmatmul.mubr.f32.gmra.mxu0 %v363
    %v950 = vpop.f32.mrf.mxu0
    %v951 = vadd.f32 0.0, %v950
    %v952 = vpop.f32.mrf.mxu0
    %953 = vmatprep.mubr.f32.mxu0 0.0
    %954 = vmatmul.mubr.f32.gmra.mxu0 %v366
    %v955 = vpop.f32.mrf.mxu0
    %v956 = vadd.f32 0.0, %v955
    %v957 = vpop.f32.mrf.mxu0
    %958 = vmatprep.mubr.f32.mxu0 0.0
    %959 = vmatmul.mubr.f32.gmra.mxu0 %v369
    %v960 = vpop.f32.mrf.mxu0
    %v961 = vadd.f32 0.0, %v960
    %v962 = vpop.f32.mrf.mxu0
    %963 = vmatprep.mubr.f32.mxu0 0.0
    %964 = vmatmul.mubr.f32.gmra.mxu0 %v372
    %v965 = vpop.f32.mrf.mxu0
    %v966 = vadd.f32 0.0, %v965
    %v967 = vpop.f32.mrf.mxu0
    %968 = vmatprep.mubr.f32.mxu0 0.0
    %969 = vmatmul.mubr.f32.gmra.mxu0 %v375
    %v970 = vpop.f32.mrf.mxu0
    %v971 = vadd.f32 0.0, %v970
    %v972 = vpop.f32.mrf.mxu0
    %973 = vmatprep.mubr.f32.mxu0 0.0
    %974 = vmatmul.mubr.f32.gmra.mxu0 %v378
    %v975 = vpop.f32.mrf.mxu0
    %v976 = vadd.f32 0.0, %v975
    %v977 = vpop.f32.mrf.mxu0
    %978 = vmatprep.mubr.f32.mxu0 0.0
    %979 = vmatmul.mubr.f32.gmra.mxu0 %v381
    %v980 = vpop.f32.mrf.mxu0
    %v981 = vadd.f32 0.0, %v980
    %v982 = vpop.f32.mrf.mxu0
    %983 = vmatprep.mubr.f32.mxu0 0.0
    %984 = vmatmul.mubr.f32.gmra.mxu0 %v384
    %v985 = vpop.f32.mrf.mxu0
    %v986 = vadd.f32 0.0, %v985
    %v987 = vpop.f32.mrf.mxu0
    %988 = vmatprep.mubr.f32.mxu0 0.0
    %989 = vmatmul.mubr.f32.gmra.mxu0 %v387
    %v990 = vpop.f32.mrf.mxu0
    %v991 = vadd.f32 0.0, %v990
    %v992 = vpop.f32.mrf.mxu0
    %993 = vmatprep.mubr.f32.mxu0 0.0
    %994 = vmatmul.mubr.f32.gmra.mxu0 %v390
    %v995 = vpop.f32.mrf.mxu0
    %v996 = vadd.f32 0.0, %v995
    %v997 = vpop.f32.mrf.mxu0
    %998 = vmatprep.mubr.f32.mxu0 0.0
    %999 = vmatmul.mubr.f32.gmra.mxu0 %v393
    %v1000 = vpop.f32.mrf.mxu0
    %v1001 = vadd.f32 0.0, %v1000
    %v1002 = vpop.f32.mrf.mxu0
    %1003 = vmatprep.mubr.f32.mxu0 0.0
    %1004 = vmatmul.mubr.f32.gmra.mxu0 %v396
    %v1005 = vpop.f32.mrf.mxu0
    %v1006 = vadd.f32 0.0, %v1005
    %v1007 = vpop.f32.mrf.mxu0
    %1008 = vmatprep.mubr.f32.mxu0 0.0
    %1009 = vmatmul.mubr.f32.gmra.mxu0 %v399
    %v1010 = vpop.f32.mrf.mxu0
    %v1011 = vadd.f32 0.0, %v1010
    %v1012 = vpop.f32.mrf.mxu0
    %1013 = vmatprep.mubr.f32.mxu0 0.0
    %1014 = vmatmul.mubr.f32.gmra.mxu0 %v402
    %v1015 = vpop.f32.mrf.mxu0
    %v1016 = vadd.f32 0.0, %v1015
    %v1017 = vpop.f32.mrf.mxu0
    %1018 = vmatprep.mubr.f32.mxu0 0.0
    %1019 = vmatmul.mubr.f32.gmra.mxu0 %v405
    %v1020 = vpop.f32.mrf.mxu0
    %v1021 = vadd.f32 0.0, %v1020
    %v1022 = vpop.f32.mrf.mxu0
    %1023 = vmatprep.mubr.f32.mxu0 0.0
    %1024 = vmatmul.mubr.f32.gmra.mxu0 %v408
    %v1025 = vpop.f32.mrf.mxu0
    %v1026 = vadd.f32 0.0, %v1025
    %v1027 = vpop.f32.mrf.mxu0
    %1028 = vmatprep.mubr.f32.mxu0 0.0
    %1029 = vmatmul.mubr.f32.gmra.mxu0 %v411
    %v1030 = vpop.f32.mrf.mxu0
    %v1031 = vadd.f32 0.0, %v1030
    %v1032 = vpop.f32.mrf.mxu0
    %1033 = vmatprep.mubr.f32.mxu0 0.0
    %1034 = vmatmul.mubr.f32.gmra.mxu0 %v414
    %v1035 = vpop.f32.mrf.mxu0
    %v1036 = vadd.f32 0.0, %v1035
    %v1037 = vpop.f32.mrf.mxu0
    %1038 = vmatprep.mubr.f32.mxu0 0.0
    %1039 = vmatmul.mubr.f32.gmra.mxu0 %v417
    %v1040 = vpop.f32.mrf.mxu0
    %v1041 = vadd.f32 0.0, %v1040
    %v1042 = vpop.f32.mrf.mxu0
    %1043 = vmatprep.mubr.f32.mxu0 0.0
    %1044 = vmatmul.mubr.f32.gmra.mxu0 %v420
    %v1045 = vpop.f32.mrf.mxu0
    %v1046 = vadd.f32 0.0, %v1045
    %v1047 = vpop.f32.mrf.mxu0
    %1048 = vmatprep.mubr.f32.mxu0 0.0
    %1049 = vmatmul.mubr.f32.gmra.mxu0 %v423
    %v1050 = vpop.f32.mrf.mxu0
    %v1051 = vadd.f32 0.0, %v1050
    %v1052 = vpop.f32.mrf.mxu0
    %1053 = vmatprep.mubr.f32.mxu0 0.0
    %1054 = vmatmul.mubr.f32.gmra.mxu0 %v426
    %v1055 = vpop.f32.mrf.mxu0
    %v1056 = vadd.f32 0.0, %v1055
    %v1057 = vpop.f32.mrf.mxu0
    %1058 = vmatprep.mubr.f32.mxu0 0.0
    %1059 = vmatmul.mubr.f32.gmra.mxu0 %v429
    %v1060 = vpop.f32.mrf.mxu0
    %v1061 = vadd.f32 0.0, %v1060
    %v1062 = vpop.f32.mrf.mxu0
    %1063 = vmatprep.mubr.f32.mxu0 0.0
    %1064 = vmatmul.mubr.f32.gmra.mxu0 %v432
    %v1065 = vpop.f32.mrf.mxu0
    %v1066 = vadd.f32 0.0, %v1065
    %v1067 = vpop.f32.mrf.mxu0
    %1068 = vmatprep.mubr.f32.mxu0 0.0
    %1069 = vmatmul.mubr.f32.gmra.mxu0 %v435
    %v1070 = vpop.f32.mrf.mxu0
    %v1071 = vadd.f32 0.0, %v1070
    %v1072 = vpop.f32.mrf.mxu0
    %1073 = vmatprep.mubr.f32.mxu0 0.0
    %1074 = vmatmul.mubr.f32.gmra.mxu0 %v438
    %v1075 = vpop.f32.mrf.mxu0
    %v1076 = vadd.f32 0.0, %v1075
    %v1077 = vpop.f32.mrf.mxu0
    %1078 = vmatprep.mubr.f32.mxu0 0.0
    %1079 = vmatmul.mubr.f32.gmra.mxu0 %v441
    %v1080 = vpop.f32.mrf.mxu0
    %v1081 = vadd.f32 0.0, %v1080
    %v1082 = vpop.f32.mrf.mxu0
    %1083 = vmatprep.mubr.f32.mxu0 0.0
    %1084 = vmatmul.mubr.f32.gmra.mxu0 %v444
    %v1085 = vpop.f32.mrf.mxu0
    %v1086 = vadd.f32 0.0, %v1085
    %v1087 = vpop.f32.mrf.mxu0
    %1088 = vmatprep.mubr.f32.mxu0 0.0
    %1089 = vmatmul.mubr.f32.gmra.mxu0 %v447
    %v1090 = vpop.f32.mrf.mxu0
    %v1091 = vadd.f32 0.0, %v1090
    %v1092 = vpop.f32.mrf.mxu0
    %1093 = vmatprep.mubr.f32.mxu0 0.0
    %1094 = vmatmul.mubr.f32.gmra.mxu0 %v450
    %v1095 = vpop.f32.mrf.mxu0
    %v1096 = vadd.f32 0.0, %v1095
    %v1097 = vpop.f32.mrf.mxu0
    %1098 = vmatprep.mubr.f32.mxu0 0.0
    %1099 = vmatmul.mubr.f32.gmra.mxu0 %v453
    %v1100 = vpop.f32.mrf.mxu0
    %v1101 = vadd.f32 0.0, %v1100
    %v1102 = vpop.f32.mrf.mxu0
    %1103 = vmatprep.mubr.f32.mxu0 0.0
    %1104 = vmatmul.mubr.f32.gmra.mxu0 %v456
    %v1105 = vpop.f32.mrf.mxu0
    %v1106 = vadd.f32 0.0, %v1105
    %v1107 = vpop.f32.mrf.mxu0
    %1108 = vmatprep.mubr.f32.mxu0 0.0
    %1109 = vmatmul.mubr.f32.gmra.mxu0 %v459
    %v1110 = vpop.f32.mrf.mxu0
    %v1111 = vadd.f32 0.0, %v1110
    %v1112 = vpop.f32.mrf.mxu0
    %1113 = vmatprep.mubr.f32.mxu0 0.0
    %1114 = vmatmul.mubr.f32.gmra.mxu0 %v462
    %v1115 = vpop.f32.mrf.mxu0
    %v1116 = vadd.f32 0.0, %v1115
    %v1117 = vpop.f32.mrf.mxu0
    %1118 = vmatprep.mubr.f32.mxu0 0.0
    %1119 = vmatmul.mubr.f32.gmra.mxu0 %v465
    %v1120 = vpop.f32.mrf.mxu0
    %v1121 = vadd.f32 0.0, %v1120
    %v1122 = vpop.f32.mrf.mxu0
    %1123 = vmatprep.mubr.f32.mxu0 0.0
    %1124 = vmatmul.mubr.f32.gmra.mxu0 %v468
    %v1125 = vpop.f32.mrf.mxu0
    %v1126 = vadd.f32 0.0, %v1125
    %v1127 = vpop.f32.mrf.mxu0
    %1128 = vmatprep.mubr.f32.mxu0 0.0
    %1129 = vmatmul.mubr.f32.gmra.mxu0 %v471
    %v1130 = vpop.f32.mrf.mxu0
    %v1131 = vadd.f32 0.0, %v1130
    %v1132 = vpop.f32.mrf.mxu0
    %1133 = vmatprep.mubr.f32.mxu0 0.0
    %1134 = vmatmul.mubr.f32.gmra.mxu0 %v474
    %v1135 = vpop.f32.mrf.mxu0
    %v1136 = vadd.f32 0.0, %v1135
    %v1137 = vpop.f32.mrf.mxu0
    %1138 = vmatprep.mubr.f32.mxu0 0.0
    %1139 = vmatmul.mubr.f32.gmra.mxu0 %v477
    %v1140 = vpop.f32.mrf.mxu0
    %v1141 = vadd.f32 0.0, %v1140
    %v1142 = vpop.f32.mrf.mxu0
    %1143 = vmatprep.mubr.f32.mxu0 0.0
    %1144 = vmatmul.mubr.f32.gmra.mxu0 %v480
    %v1145 = vpop.f32.mrf.mxu0
    %v1146 = vadd.f32 0.0, %v1145
    %v1147 = vpop.f32.mrf.mxu0
    %1148 = vmatprep.mubr.f32.mxu0 0.0
    %1149 = vmatmul.mubr.f32.gmra.mxu0 %v483
    %v1150 = vpop.f32.mrf.mxu0
    %v1151 = vadd.f32 0.0, %v1150
    %v1152 = vpop.f32.mrf.mxu0
    %1153 = vmatprep.mubr.f32.mxu0 0.0
    %1154 = vmatmul.mubr.f32.gmra.mxu0 %v486
    %v1155 = vpop.f32.mrf.mxu0
    %v1156 = vadd.f32 0.0, %v1155
    %v1157 = vpop.f32.mrf.mxu0
    %1158 = vmatprep.mubr.f32.mxu0 0.0
    %1159 = vmatmul.mubr.f32.gmra.mxu0 %v489
    %v1160 = vpop.f32.mrf.mxu0
    %v1161 = vadd.f32 0.0, %v1160
    %v1162 = vpop.f32.mrf.mxu0
    %1163 = vmatprep.mubr.f32.mxu0 0.0
    %1164 = vmatmul.mubr.f32.gmra.mxu0 %v492
    %v1165 = vpop.f32.mrf.mxu0
    %v1166 = vadd.f32 0.0, %v1165
    %v1167 = vpop.f32.mrf.mxu0
    %1168 = vmatprep.mubr.f32.mxu0 0.0
    %1169 = vmatmul.mubr.f32.gmra.mxu0 %v495
    %v1170 = vpop.f32.mrf.mxu0
    %v1171 = vadd.f32 0.0, %v1170
    %v1172 = vpop.f32.mrf.mxu0
    %1173 = vmatprep.mubr.f32.mxu0 0.0
    %1174 = vmatmul.mubr.f32.gmra.mxu0 %v498
    %v1175 = vpop.f32.mrf.mxu0
    %v1176 = vadd.f32 0.0, %v1175
    %v1177 = vpop.f32.mrf.mxu0
    %1178 = vmatprep.mubr.f32.mxu0 0.0
    %1179 = vmatmul.mubr.f32.gmra.mxu0 %v501
    %v1180 = vpop.f32.mrf.mxu0
    %v1181 = vadd.f32 0.0, %v1180
    %v1182 = vpop.f32.mrf.mxu0
    %1183 = vmatprep.mubr.f32.mxu0 0.0
    %1184 = vmatmul.mubr.f32.gmra.mxu0 %v504
    %v1185 = vpop.f32.mrf.mxu0
    %v1186 = vadd.f32 0.0, %v1185
    %v1187 = vpop.f32.mrf.mxu0
    %1188 = vmatprep.mubr.f32.mxu0 0.0
    %1189 = vmatmul.mubr.f32.gmra.mxu0 %v507
    %v1190 = vpop.f32.mrf.mxu0
    %v1191 = vadd.f32 0.0, %v1190
    %v1192 = vpop.f32.mrf.mxu0
    %1193 = vmatprep.mubr.f32.mxu0 0.0
    %1194 = vmatmul.mubr.f32.gmra.mxu0 %v510
    %v1195 = vpop.f32.mrf.mxu0
    %v1196 = vadd.f32 0.0, %v1195
    %v1197 = vpop.f32.mrf.mxu0
    %1198 = vmatprep.mubr.f32.mxu0 0.0
    %1199 = vmatmul.mubr.f32.gmra.mxu0 %v513
    %v1200 = vpop.f32.mrf.mxu0
    %v1201 = vadd.f32 0.0, %v1200
    %v1202 = vpop.f32.mrf.mxu0
    %1203 = vmatprep.mubr.f32.mxu0 0.0
    %1204 = vmatmul.mubr.f32.gmra.mxu0 %v516
    %v1205 = vpop.f32.mrf.mxu0
    %v1206 = vadd.f32 0.0, %v1205
    %v1207 = vpop.f32.mrf.mxu0
    %1208 = vmatprep.mubr.f32.mxu0 0.0
    %1209 = vmatmul.mubr.f32.gmra.mxu0 %v519
    %v1210 = vpop.f32.mrf.mxu0
    %v1211 = vadd.f32 0.0, %v1210
    %v1212 = vpop.f32.mrf.mxu0
    %1213 = vmatprep.mubr.f32.mxu0 0.0
    %1214 = vmatmul.mubr.f32.gmra.mxu0 %v522
    %v1215 = vpop.f32.mrf.mxu0
    %v1216 = vadd.f32 0.0, %v1215
    %v1217 = vpop.f32.mrf.mxu0
    %1218 = vmatprep.mubr.f32.mxu0 0.0
    %1219 = vmatmul.mubr.f32.gmra.mxu0 %v525
    %v1220 = vpop.f32.mrf.mxu0
    %v1221 = vadd.f32 0.0, %v1220
    %v1222 = vpop.f32.mrf.mxu0
    %1223 = vmatprep.mubr.f32.mxu0 0.0
    %1224 = vmatmul.mubr.f32.gmra.mxu0 %v528
    %v1225 = vpop.f32.mrf.mxu0
    %v1226 = vadd.f32 0.0, %v1225
    %v1227 = vpop.f32.mrf.mxu0
    %1228 = vmatprep.mubr.f32.mxu0 0.0
    %1229 = vmatmul.mubr.f32.gmra.mxu0 %v531
    %v1230 = vpop.f32.mrf.mxu0
    %v1231 = vadd.f32 0.0, %v1230
    %v1232 = vpop.f32.mrf.mxu0
    %1233 = vmatprep.mubr.f32.mxu0 0.0
    %1234 = vmatmul.mubr.f32.gmra.mxu0 %v534
    %v1235 = vpop.f32.mrf.mxu0
    %v1236 = vadd.f32 0.0, %v1235
    %v1237 = vpop.f32.mrf.mxu0
    %1238 = vmatprep.mubr.f32.mxu0 0.0
    %1239 = vmatmul.mubr.f32.gmra.mxu0 %v537
    %v1240 = vpop.f32.mrf.mxu0
    %v1241 = vadd.f32 0.0, %v1240
    %v1242 = vpop.f32.mrf.mxu0
    %1243 = vdwg.mxu0
    %v1244 = vpack.c.bf16 %v611, %v606
    %v1245 = vpack.c.bf16 %v621, %v616
    %v1246 = vpack.c.bf16 %v631, %v626
    %v1247 = vpack.c.bf16 %v641, %v636
    %v1248 = vpack.c.bf16 %v651, %v646
    %v1249 = vpack.c.bf16 %v661, %v656
    %v1250 = vpack.c.bf16 %v671, %v666
    %v1251 = vpack.c.bf16 %v681, %v676
    %v1252 = vpack.c.bf16 %v691, %v686
    %v1253 = vpack.c.bf16 %v701, %v696
    %v1254 = vpack.c.bf16 %v711, %v706
    %v1255 = vpack.c.bf16 %v721, %v716
    %v1256 = vpack.c.bf16 %v731, %v726
    %v1257 = vpack.c.bf16 %v741, %v736
    %v1258 = vpack.c.bf16 %v751, %v746
    %v1259 = vpack.c.bf16 %v761, %v756
    %v1260 = vpack.c.bf16 %v771, %v766
    %v1261 = vpack.c.bf16 %v781, %v776
    %v1262 = vpack.c.bf16 %v791, %v786
    %v1263 = vpack.c.bf16 %v801, %v796
    %v1264 = vpack.c.bf16 %v811, %v806
    %v1265 = vpack.c.bf16 %v821, %v816
    %v1266 = vpack.c.bf16 %v831, %v826
    %v1267 = vpack.c.bf16 %v841, %v836
    %v1268 = vpack.c.bf16 %v851, %v846
    %v1269 = vpack.c.bf16 %v861, %v856
    %v1270 = vpack.c.bf16 %v871, %v866
    %v1271 = vpack.c.bf16 %v881, %v876
    %v1272 = vpack.c.bf16 %v891, %v886
    %v1273 = vpack.c.bf16 %v901, %v896
    %v1274 = vpack.c.bf16 %v911, %v906
    %v1275 = vpack.c.bf16 %v921, %v916
    %v1276 = vpack.c.bf16 %v931, %v926
    %v1277 = vpack.c.bf16 %v941, %v936
    %v1278 = vpack.c.bf16 %v951, %v946
    %v1279 = vpack.c.bf16 %v961, %v956
    %v1280 = vpack.c.bf16 %v971, %v966
    %v1281 = vpack.c.bf16 %v981, %v976
    %v1282 = vpack.c.bf16 %v991, %v986
    %v1283 = vpack.c.bf16 %v1001, %v996
    %v1284 = vpack.c.bf16 %v1011, %v1006
    %v1285 = vpack.c.bf16 %v1021, %v1016
    %v1286 = vpack.c.bf16 %v1031, %v1026
    %v1287 = vpack.c.bf16 %v1041, %v1036
    %v1288 = vpack.c.bf16 %v1051, %v1046
    %v1289 = vpack.c.bf16 %v1061, %v1056
    %v1290 = vpack.c.bf16 %v1071, %v1066
    %v1291 = vpack.c.bf16 %v1081, %v1076
    %v1292 = vpack.c.bf16 %v1091, %v1086
    %v1293 = vpack.c.bf16 %v1101, %v1096
    %v1294 = vpack.c.bf16 %v1111, %v1106
    %v1295 = vpack.c.bf16 %v1121, %v1116
    %v1296 = vpack.c.bf16 %v1131, %v1126
    %v1297 = vpack.c.bf16 %v1141, %v1136
    %v1298 = vpack.c.bf16 %v1151, %v1146
    %v1299 = vpack.c.bf16 %v1161, %v1156
    %v1300 = vpack.c.bf16 %v1171, %v1166
    %v1301 = vpack.c.bf16 %v1181, %v1176
    %v1302 = vpack.c.bf16 %v1191, %v1186
    %v1303 = vpack.c.bf16 %v1201, %v1196
    %v1304 = vpack.c.bf16 %v1211, %v1206
    %v1305 = vpack.c.bf16 %v1221, %v1216
    %v1306 = vpack.c.bf16 %v1231, %v1226
    %v1307 = vpack.c.bf16 %v1241, %v1236
    %v1372 = vunpack.c.l.b16 %v1244
    %v1373 = vunpack.c.h.b16 %v1244
    %v1374 = vunpack.c.l.b16 %v1245
    %v1375 = vunpack.c.h.b16 %v1245
    %v1376 = vunpack.c.l.b16 %v1246
    %v1377 = vunpack.c.h.b16 %v1246
    %v1378 = vunpack.c.l.b16 %v1247
    %v1379 = vunpack.c.h.b16 %v1247
    %v1380 = vunpack.c.l.b16 %v1248
    %v1381 = vunpack.c.h.b16 %v1248
    %v1382 = vunpack.c.l.b16 %v1249
    %v1383 = vunpack.c.h.b16 %v1249
    %v1384 = vunpack.c.l.b16 %v1250
    %v1385 = vunpack.c.h.b16 %v1250
    %v1386 = vunpack.c.l.b16 %v1251
    %v1387 = vunpack.c.h.b16 %v1251
    %v1388 = vunpack.c.l.b16 %v1252
    %v1389 = vunpack.c.h.b16 %v1252
    %v1390 = vunpack.c.l.b16 %v1253
    %v1391 = vunpack.c.h.b16 %v1253
    %v1392 = vunpack.c.l.b16 %v1254
    %v1393 = vunpack.c.h.b16 %v1254
    %v1394 = vunpack.c.l.b16 %v1255
    %v1395 = vunpack.c.h.b16 %v1255
    %v1396 = vunpack.c.l.b16 %v1256
    %v1397 = vunpack.c.h.b16 %v1256
    %v1398 = vunpack.c.l.b16 %v1257
    %v1399 = vunpack.c.h.b16 %v1257
    %v1400 = vunpack.c.l.b16 %v1258
    %v1401 = vunpack.c.h.b16 %v1258
    %v1402 = vunpack.c.l.b16 %v1259
    %v1403 = vunpack.c.h.b16 %v1259
    %v1404 = vunpack.c.l.b16 %v1260
    %v1405 = vunpack.c.h.b16 %v1260
    %v1406 = vunpack.c.l.b16 %v1261
    %v1407 = vunpack.c.h.b16 %v1261
    %v1408 = vunpack.c.l.b16 %v1262
    %v1409 = vunpack.c.h.b16 %v1262
    %v1410 = vunpack.c.l.b16 %v1263
    %v1411 = vunpack.c.h.b16 %v1263
    %v1412 = vunpack.c.l.b16 %v1264
    %v1413 = vunpack.c.h.b16 %v1264
    %v1414 = vunpack.c.l.b16 %v1265
    %v1415 = vunpack.c.h.b16 %v1265
    %v1416 = vunpack.c.l.b16 %v1266
    %v1417 = vunpack.c.h.b16 %v1266
    %v1418 = vunpack.c.l.b16 %v1267
    %v1419 = vunpack.c.h.b16 %v1267
    %v1420 = vunpack.c.l.b16 %v1268
    %v1421 = vunpack.c.h.b16 %v1268
    %v1422 = vunpack.c.l.b16 %v1269
    %v1423 = vunpack.c.h.b16 %v1269
    %v1424 = vunpack.c.l.b16 %v1270
    %v1425 = vunpack.c.h.b16 %v1270
    %v1426 = vunpack.c.l.b16 %v1271
    %v1427 = vunpack.c.h.b16 %v1271
    %v1428 = vunpack.c.l.b16 %v1272
    %v1429 = vunpack.c.h.b16 %v1272
    %v1430 = vunpack.c.l.b16 %v1273
    %v1431 = vunpack.c.h.b16 %v1273
    %v1432 = vunpack.c.l.b16 %v1274
    %v1433 = vunpack.c.h.b16 %v1274
    %v1434 = vunpack.c.l.b16 %v1275
    %v1435 = vunpack.c.h.b16 %v1275
    %v1436 = vunpack.c.l.b16 %v1276
    %v1437 = vunpack.c.h.b16 %v1276
    %v1438 = vunpack.c.l.b16 %v1277
    %v1439 = vunpack.c.h.b16 %v1277
    %v1440 = vunpack.c.l.b16 %v1278
    %v1441 = vunpack.c.h.b16 %v1278
    %v1442 = vunpack.c.l.b16 %v1279
    %v1443 = vunpack.c.h.b16 %v1279
    %v1444 = vunpack.c.l.b16 %v1280
    %v1445 = vunpack.c.h.b16 %v1280
    %v1446 = vunpack.c.l.b16 %v1281
    %v1447 = vunpack.c.h.b16 %v1281
    %v1448 = vunpack.c.l.b16 %v1282
    %v1449 = vunpack.c.h.b16 %v1282
    %v1450 = vunpack.c.l.b16 %v1283
    %v1451 = vunpack.c.h.b16 %v1283
    %v1452 = vunpack.c.l.b16 %v1284
    %v1453 = vunpack.c.h.b16 %v1284
    %v1454 = vunpack.c.l.b16 %v1285
    %v1455 = vunpack.c.h.b16 %v1285
    %v1456 = vunpack.c.l.b16 %v1286
    %v1457 = vunpack.c.h.b16 %v1286
    %v1458 = vunpack.c.l.b16 %v1287
    %v1459 = vunpack.c.h.b16 %v1287
    %v1460 = vunpack.c.l.b16 %v1288
    %v1461 = vunpack.c.h.b16 %v1288
    %v1462 = vunpack.c.l.b16 %v1289
    %v1463 = vunpack.c.h.b16 %v1289
    %v1464 = vunpack.c.l.b16 %v1290
    %v1465 = vunpack.c.h.b16 %v1290
    %v1466 = vunpack.c.l.b16 %v1291
    %v1467 = vunpack.c.h.b16 %v1291
    %v1468 = vunpack.c.l.b16 %v1292
    %v1469 = vunpack.c.h.b16 %v1292
    %v1470 = vunpack.c.l.b16 %v1293
    %v1471 = vunpack.c.h.b16 %v1293
    %v1472 = vunpack.c.l.b16 %v1294
    %v1473 = vunpack.c.h.b16 %v1294
    %v1474 = vunpack.c.l.b16 %v1295
    %v1475 = vunpack.c.h.b16 %v1295
    %v1476 = vunpack.c.l.b16 %v1296
    %v1477 = vunpack.c.h.b16 %v1296
    %v1478 = vunpack.c.l.b16 %v1297
    %v1479 = vunpack.c.h.b16 %v1297
    %v1480 = vunpack.c.l.b16 %v1298
    %v1481 = vunpack.c.h.b16 %v1298
    %v1482 = vunpack.c.l.b16 %v1299
    %v1483 = vunpack.c.h.b16 %v1299
    %v1484 = vunpack.c.l.b16 %v1300
    %v1485 = vunpack.c.h.b16 %v1300
    %v1486 = vunpack.c.l.b16 %v1301
    %v1487 = vunpack.c.h.b16 %v1301
    %v1488 = vunpack.c.l.b16 %v1302
    %v1489 = vunpack.c.h.b16 %v1302
    %v1490 = vunpack.c.l.b16 %v1303
    %v1491 = vunpack.c.h.b16 %v1303
    %v1492 = vunpack.c.l.b16 %v1304
    %v1493 = vunpack.c.h.b16 %v1304
    %v1494 = vunpack.c.l.b16 %v1305
    %v1495 = vunpack.c.h.b16 %v1305
    %v1496 = vunpack.c.l.b16 %v1306
    %v1497 = vunpack.c.h.b16 %v1306
    %v1498 = vunpack.c.l.b16 %v1307
    %v1499 = vunpack.c.h.b16 %v1307
    %v1500 = vpack.c.b16 %v1372, %v1372
    %v1501 = vpack.c.b16 %v1373, %v1373
    %v1502 = vpack.c.b16 %v1374, %v1374
    %v1503 = vpack.c.b16 %v1375, %v1375
    %v1504 = vpack.c.b16 %v1376, %v1376
    %v1505 = vpack.c.b16 %v1377, %v1377
    %v1506 = vpack.c.b16 %v1378, %v1378
    %v1507 = vpack.c.b16 %v1379, %v1379
    %v1508 = vpack.c.b16 %v1380, %v1380
    %v1509 = vpack.c.b16 %v1381, %v1381
    %v1510 = vpack.c.b16 %v1382, %v1382
    %v1511 = vpack.c.b16 %v1383, %v1383
    %v1512 = vpack.c.b16 %v1384, %v1384
    %v1513 = vpack.c.b16 %v1385, %v1385
    %v1514 = vpack.c.b16 %v1386, %v1386
    %v1515 = vpack.c.b16 %v1387, %v1387
    %v1516 = vpack.c.b16 %v1388, %v1388
    %v1517 = vpack.c.b16 %v1389, %v1389
    %v1518 = vpack.c.b16 %v1390, %v1390
    %v1519 = vpack.c.b16 %v1391, %v1391
    %v1520 = vpack.c.b16 %v1392, %v1392
    %v1521 = vpack.c.b16 %v1393, %v1393
    %v1522 = vpack.c.b16 %v1394, %v1394
    %v1523 = vpack.c.b16 %v1395, %v1395
    %v1524 = vpack.c.b16 %v1396, %v1396
    %v1525 = vpack.c.b16 %v1397, %v1397
    %v1526 = vpack.c.b16 %v1398, %v1398
    %v1527 = vpack.c.b16 %v1399, %v1399
    %v1528 = vpack.c.b16 %v1400, %v1400
    %v1529 = vpack.c.b16 %v1401, %v1401
    %v1530 = vpack.c.b16 %v1402, %v1402
    %v1531 = vpack.c.b16 %v1403, %v1403
    %v1532 = vpack.c.b16 %v1404, %v1404
    %v1533 = vpack.c.b16 %v1405, %v1405
    %v1534 = vpack.c.b16 %v1406, %v1406
    %v1535 = vpack.c.b16 %v1407, %v1407
    %v1536 = vpack.c.b16 %v1408, %v1408
    %v1537 = vpack.c.b16 %v1409, %v1409
    %v1538 = vpack.c.b16 %v1410, %v1410
    %v1539 = vpack.c.b16 %v1411, %v1411
    %v1540 = vpack.c.b16 %v1412, %v1412
    %v1541 = vpack.c.b16 %v1413, %v1413
    %v1542 = vpack.c.b16 %v1414, %v1414
    %v1543 = vpack.c.b16 %v1415, %v1415
    %v1544 = vpack.c.b16 %v1416, %v1416
    %v1545 = vpack.c.b16 %v1417, %v1417
    %v1546 = vpack.c.b16 %v1418, %v1418
    %v1547 = vpack.c.b16 %v1419, %v1419
    %v1548 = vpack.c.b16 %v1420, %v1420
    %v1549 = vpack.c.b16 %v1421, %v1421
    %v1550 = vpack.c.b16 %v1422, %v1422
    %v1551 = vpack.c.b16 %v1423, %v1423
    %v1552 = vpack.c.b16 %v1424, %v1424
    %v1553 = vpack.c.b16 %v1425, %v1425
    %v1554 = vpack.c.b16 %v1426, %v1426
    %v1555 = vpack.c.b16 %v1427, %v1427
    %v1556 = vpack.c.b16 %v1428, %v1428
    %v1557 = vpack.c.b16 %v1429, %v1429
    %v1558 = vpack.c.b16 %v1430, %v1430
    %v1559 = vpack.c.b16 %v1431, %v1431
    %v1560 = vpack.c.b16 %v1432, %v1432
    %v1561 = vpack.c.b16 %v1433, %v1433
    %v1562 = vpack.c.b16 %v1434, %v1434
    %v1563 = vpack.c.b16 %v1435, %v1435
    %v1564 = vpack.c.b16 %v1436, %v1436
    %v1565 = vpack.c.b16 %v1437, %v1437
    %v1566 = vpack.c.b16 %v1438, %v1438
    %v1567 = vpack.c.b16 %v1439, %v1439
    %v1568 = vpack.c.b16 %v1440, %v1440
    %v1569 = vpack.c.b16 %v1441, %v1441
    %v1570 = vpack.c.b16 %v1442, %v1442
    %v1571 = vpack.c.b16 %v1443, %v1443
    %v1572 = vpack.c.b16 %v1444, %v1444
    %v1573 = vpack.c.b16 %v1445, %v1445
    %v1574 = vpack.c.b16 %v1446, %v1446
    %v1575 = vpack.c.b16 %v1447, %v1447
    %v1576 = vpack.c.b16 %v1448, %v1448
    %v1577 = vpack.c.b16 %v1449, %v1449
    %v1578 = vpack.c.b16 %v1450, %v1450
    %v1579 = vpack.c.b16 %v1451, %v1451
    %v1580 = vpack.c.b16 %v1452, %v1452
    %v1581 = vpack.c.b16 %v1453, %v1453
    %v1582 = vpack.c.b16 %v1454, %v1454
    %v1583 = vpack.c.b16 %v1455, %v1455
    %v1584 = vpack.c.b16 %v1456, %v1456
    %v1585 = vpack.c.b16 %v1457, %v1457
    %v1586 = vpack.c.b16 %v1458, %v1458
    %v1587 = vpack.c.b16 %v1459, %v1459
    %v1588 = vpack.c.b16 %v1460, %v1460
    %v1589 = vpack.c.b16 %v1461, %v1461
    %v1590 = vpack.c.b16 %v1462, %v1462
    %v1591 = vpack.c.b16 %v1463, %v1463
    %v1592 = vpack.c.b16 %v1464, %v1464
    %v1593 = vpack.c.b16 %v1465, %v1465
    %v1594 = vpack.c.b16 %v1466, %v1466
    %v1595 = vpack.c.b16 %v1467, %v1467
    %v1596 = vpack.c.b16 %v1468, %v1468
    %v1597 = vpack.c.b16 %v1469, %v1469
    %v1598 = vpack.c.b16 %v1470, %v1470
    %v1599 = vpack.c.b16 %v1471, %v1471
    %v1600 = vpack.c.b16 %v1472, %v1472
    %v1601 = vpack.c.b16 %v1473, %v1473
    %v1602 = vpack.c.b16 %v1474, %v1474
    %v1603 = vpack.c.b16 %v1475, %v1475
    %v1604 = vpack.c.b16 %v1476, %v1476
    %v1605 = vpack.c.b16 %v1477, %v1477
    %v1606 = vpack.c.b16 %v1478, %v1478
    %v1607 = vpack.c.b16 %v1479, %v1479
    %v1608 = vpack.c.b16 %v1480, %v1480
    %v1609 = vpack.c.b16 %v1481, %v1481
    %v1610 = vpack.c.b16 %v1482, %v1482
    %v1611 = vpack.c.b16 %v1483, %v1483
    %v1612 = vpack.c.b16 %v1484, %v1484
    %v1613 = vpack.c.b16 %v1485, %v1485
    %v1614 = vpack.c.b16 %v1486, %v1486
    %v1615 = vpack.c.b16 %v1487, %v1487
    %v1616 = vpack.c.b16 %v1488, %v1488
    %v1617 = vpack.c.b16 %v1489, %v1489
    %v1618 = vpack.c.b16 %v1490, %v1490
    %v1619 = vpack.c.b16 %v1491, %v1491
    %v1620 = vpack.c.b16 %v1492, %v1492
    %v1621 = vpack.c.b16 %v1493, %v1493
    %v1622 = vpack.c.b16 %v1494, %v1494
    %v1623 = vpack.c.b16 %v1495, %v1495
    %v1624 = vpack.c.b16 %v1496, %v1496
    %v1625 = vpack.c.b16 %v1497, %v1497
    %v1626 = vpack.c.b16 %v1498, %v1498
    %v1627 = vpack.c.b16 %v1499, %v1499
    %1756 = vst [vmem:[#allocation2] sm:$0xf] %v1500
    %1757 = vst [vmem:[#allocation2 + $0x4] sm:$0xf] %v1501
    %1758 = vst [vmem:[#allocation2 + $0x8] sm:$0xf] %v1502
    %1759 = vst [vmem:[#allocation2 + $0xc] sm:$0xf] %v1503
    %1760 = vst [vmem:[#allocation2 + $0x10] sm:$0xf] %v1504
    %1761 = vst [vmem:[#allocation2 + $0x14] sm:$0xf] %v1505
    %1762 = vst [vmem:[#allocation2 + $0x18] sm:$0xf] %v1506
    %1763 = vst [vmem:[#allocation2 + $0x1c] sm:$0xf] %v1507
    %1764 = vst [vmem:[#allocation2 + $0x20] sm:$0xf] %v1508
    %1765 = vst [vmem:[#allocation2 + $0x24] sm:$0xf] %v1509
    %1766 = vst [vmem:[#allocation2 + $0x28] sm:$0xf] %v1510
    %1767 = vst [vmem:[#allocation2 + $0x2c] sm:$0xf] %v1511
    %1768 = vst [vmem:[#allocation2 + $0x30] sm:$0xf] %v1512
    %1769 = vst [vmem:[#allocation2 + $0x34] sm:$0xf] %v1513
    %1770 = vst [vmem:[#allocation2 + $0x38] sm:$0xf] %v1514
    %1771 = vst [vmem:[#allocation2 + $0x3c] sm:$0xf] %v1515
    %1772 = vst [vmem:[#allocation2 + $0x40] sm:$0xf] %v1516
    %1773 = vst [vmem:[#allocation2 + $0x44] sm:$0xf] %v1517
    %1774 = vst [vmem:[#allocation2 + $0x48] sm:$0xf] %v1518
    %1775 = vst [vmem:[#allocation2 + $0x4c] sm:$0xf] %v1519
    %1776 = vst [vmem:[#allocation2 + $0x50] sm:$0xf] %v1520
    %1777 = vst [vmem:[#allocation2 + $0x54] sm:$0xf] %v1521
    %1778 = vst [vmem:[#allocation2 + $0x58] sm:$0xf] %v1522
    %1779 = vst [vmem:[#allocation2 + $0x5c] sm:$0xf] %v1523
    %1780 = vst [vmem:[#allocation2 + $0x60] sm:$0xf] %v1524
    %1781 = vst [vmem:[#allocation2 + $0x64] sm:$0xf] %v1525
    %1782 = vst [vmem:[#allocation2 + $0x68] sm:$0xf] %v1526
    %1783 = vst [vmem:[#allocation2 + $0x6c] sm:$0xf] %v1527
    %1784 = vst [vmem:[#allocation2 + $0x70] sm:$0xf] %v1528
    %1785 = vst [vmem:[#allocation2 + $0x74] sm:$0xf] %v1529
    %1786 = vst [vmem:[#allocation2 + $0x78] sm:$0xf] %v1530
    %1787 = vst [vmem:[#allocation2 + $0x7c] sm:$0xf] %v1531
    %1788 = vst [vmem:[#allocation2 + $0x80] sm:$0xf] %v1532
    %1789 = vst [vmem:[#allocation2 + $0x84] sm:$0xf] %v1533
    %1790 = vst [vmem:[#allocation2 + $0x88] sm:$0xf] %v1534
    %1791 = vst [vmem:[#allocation2 + $0x8c] sm:$0xf] %v1535
    %1792 = vst [vmem:[#allocation2 + $0x90] sm:$0xf] %v1536
    %1793 = vst [vmem:[#allocation2 + $0x94] sm:$0xf] %v1537
    %1794 = vst [vmem:[#allocation2 + $0x98] sm:$0xf] %v1538
    %1795 = vst [vmem:[#allocation2 + $0x9c] sm:$0xf] %v1539
    %1796 = vst [vmem:[#allocation2 + $0xa0] sm:$0xf] %v1540
    %1797 = vst [vmem:[#allocation2 + $0xa4] sm:$0xf] %v1541
    %1798 = vst [vmem:[#allocation2 + $0xa8] sm:$0xf] %v1542
    %1799 = vst [vmem:[#allocation2 + $0xac] sm:$0xf] %v1543
    %1800 = vst [vmem:[#allocation2 + $0xb0] sm:$0xf] %v1544
    %1801 = vst [vmem:[#allocation2 + $0xb4] sm:$0xf] %v1545
    %1802 = vst [vmem:[#allocation2 + $0xb8] sm:$0xf] %v1546
    %1803 = vst [vmem:[#allocation2 + $0xbc] sm:$0xf] %v1547
    %1804 = vst [vmem:[#allocation2 + $0xc0] sm:$0xf] %v1548
    %1805 = vst [vmem:[#allocation2 + $0xc4] sm:$0xf] %v1549
    %1806 = vst [vmem:[#allocation2 + $0xc8] sm:$0xf] %v1550
    %1807 = vst [vmem:[#allocation2 + $0xcc] sm:$0xf] %v1551
    %1808 = vst [vmem:[#allocation2 + $0xd0] sm:$0xf] %v1552
    %1809 = vst [vmem:[#allocation2 + $0xd4] sm:$0xf] %v1553
    %1810 = vst [vmem:[#allocation2 + $0xd8] sm:$0xf] %v1554
    %1811 = vst [vmem:[#allocation2 + $0xdc] sm:$0xf] %v1555
    %1812 = vst [vmem:[#allocation2 + $0xe0] sm:$0xf] %v1556
    %1813 = vst [vmem:[#allocation2 + $0xe4] sm:$0xf] %v1557
    %1814 = vst [vmem:[#allocation2 + $0xe8] sm:$0xf] %v1558
    %1815 = vst [vmem:[#allocation2 + $0xec] sm:$0xf] %v1559
    %1816 = vst [vmem:[#allocation2 + $0xf0] sm:$0xf] %v1560
    %1817 = vst [vmem:[#allocation2 + $0xf4] sm:$0xf] %v1561
    %1818 = vst [vmem:[#allocation2 + $0xf8] sm:$0xf] %v1562
    %1819 = vst [vmem:[#allocation2 + $0xfc] sm:$0xf] %v1563
    %1820 = vst [vmem:[#allocation2 + $0x100] sm:$0xf] %v1564
    %1821 = vst [vmem:[#allocation2 + $0x104] sm:$0xf] %v1565
    %1822 = vst [vmem:[#allocation2 + $0x108] sm:$0xf] %v1566
    %1823 = vst [vmem:[#allocation2 + $0x10c] sm:$0xf] %v1567
    %1824 = vst [vmem:[#allocation2 + $0x110] sm:$0xf] %v1568
    %1825 = vst [vmem:[#allocation2 + $0x114] sm:$0xf] %v1569
    %1826 = vst [vmem:[#allocation2 + $0x118] sm:$0xf] %v1570
    %1827 = vst [vmem:[#allocation2 + $0x11c] sm:$0xf] %v1571
    %1828 = vst [vmem:[#allocation2 + $0x120] sm:$0xf] %v1572
    %1829 = vst [vmem:[#allocation2 + $0x124] sm:$0xf] %v1573
    %1830 = vst [vmem:[#allocation2 + $0x128] sm:$0xf] %v1574
    %1831 = vst [vmem:[#allocation2 + $0x12c] sm:$0xf] %v1575
    %1832 = vst [vmem:[#allocation2 + $0x130] sm:$0xf] %v1576
    %1833 = vst [vmem:[#allocation2 + $0x134] sm:$0xf] %v1577
    %1834 = vst [vmem:[#allocation2 + $0x138] sm:$0xf] %v1578
    %1835 = vst [vmem:[#allocation2 + $0x13c] sm:$0xf] %v1579
    %1836 = vst [vmem:[#allocation2 + $0x140] sm:$0xf] %v1580
    %1837 = vst [vmem:[#allocation2 + $0x144] sm:$0xf] %v1581
    %1838 = vst [vmem:[#allocation2 + $0x148] sm:$0xf] %v1582
    %1839 = vst [vmem:[#allocation2 + $0x14c] sm:$0xf] %v1583
    %1840 = vst [vmem:[#allocation2 + $0x150] sm:$0xf] %v1584
    %1841 = vst [vmem:[#allocation2 + $0x154] sm:$0xf] %v1585
    %1842 = vst [vmem:[#allocation2 + $0x158] sm:$0xf] %v1586
    %1843 = vst [vmem:[#allocation2 + $0x15c] sm:$0xf] %v1587
    %1844 = vst [vmem:[#allocation2 + $0x160] sm:$0xf] %v1588
    %1845 = vst [vmem:[#allocation2 + $0x164] sm:$0xf] %v1589
    %1846 = vst [vmem:[#allocation2 + $0x168] sm:$0xf] %v1590
    %1847 = vst [vmem:[#allocation2 + $0x16c] sm:$0xf] %v1591
    %1848 = vst [vmem:[#allocation2 + $0x170] sm:$0xf] %v1592
    %1849 = vst [vmem:[#allocation2 + $0x174] sm:$0xf] %v1593
    %1850 = vst [vmem:[#allocation2 + $0x178] sm:$0xf] %v1594
    %1851 = vst [vmem:[#allocation2 + $0x17c] sm:$0xf] %v1595
    %1852 = vst [vmem:[#allocation2 + $0x180] sm:$0xf] %v1596
    %1853 = vst [vmem:[#allocation2 + $0x184] sm:$0xf] %v1597
    %1854 = vst [vmem:[#allocation2 + $0x188] sm:$0xf] %v1598
    %1855 = vst [vmem:[#allocation2 + $0x18c] sm:$0xf] %v1599
    %1856 = vst [vmem:[#allocation2 + $0x190] sm:$0xf] %v1600
    %1857 = vst [vmem:[#allocation2 + $0x194] sm:$0xf] %v1601
    %1858 = vst [vmem:[#allocation2 + $0x198] sm:$0xf] %v1602
    %1859 = vst [vmem:[#allocation2 + $0x19c] sm:$0xf] %v1603
    %1860 = vst [vmem:[#allocation2 + $0x1a0] sm:$0xf] %v1604
    %1861 = vst [vmem:[#allocation2 + $0x1a4] sm:$0xf] %v1605
    %1862 = vst [vmem:[#allocation2 + $0x1a8] sm:$0xf] %v1606
    %1863 = vst [vmem:[#allocation2 + $0x1ac] sm:$0xf] %v1607
    %1864 = vst [vmem:[#allocation2 + $0x1b0] sm:$0xf] %v1608
    %1865 = vst [vmem:[#allocation2 + $0x1b4] sm:$0xf] %v1609
    %1866 = vst [vmem:[#allocation2 + $0x1b8] sm:$0xf] %v1610
    %1867 = vst [vmem:[#allocation2 + $0x1bc] sm:$0xf] %v1611
    %1868 = vst [vmem:[#allocation2 + $0x1c0] sm:$0xf] %v1612
    %1869 = vst [vmem:[#allocation2 + $0x1c4] sm:$0xf] %v1613
    %1870 = vst [vmem:[#allocation2 + $0x1c8] sm:$0xf] %v1614
    %1871 = vst [vmem:[#allocation2 + $0x1cc] sm:$0xf] %v1615
    %1872 = vst [vmem:[#allocation2 + $0x1d0] sm:$0xf] %v1616
    %1873 = vst [vmem:[#allocation2 + $0x1d4] sm:$0xf] %v1617
    %1874 = vst [vmem:[#allocation2 + $0x1d8] sm:$0xf] %v1618
    %1875 = vst [vmem:[#allocation2 + $0x1dc] sm:$0xf] %v1619
    %1876 = vst [vmem:[#allocation2 + $0x1e0] sm:$0xf] %v1620
    %1877 = vst [vmem:[#allocation2 + $0x1e4] sm:$0xf] %v1621
    %1878 = vst [vmem:[#allocation2 + $0x1e8] sm:$0xf] %v1622
    %1879 = vst [vmem:[#allocation2 + $0x1ec] sm:$0xf] %v1623
    %1880 = vst [vmem:[#allocation2 + $0x1f0] sm:$0xf] %v1624
    %1881 = vst [vmem:[#allocation2 + $0x1f4] sm:$0xf] %v1625
    %1882 = vst [vmem:[#allocation2 + $0x1f8] sm:$0xf] %v1626
    %1883 = vst [vmem:[#allocation2 + $0x1fc] sm:$0xf] %v1627
    %v1884 = vld [vmem:[%s2] sm:$0x1]
    %v1886 = vlaneseq
    %v1887 = vshrl.u32 %v1886, 7
    %v1888 = vsub.s32 0, %v1887
    %v1889 = vrot.slane %v1884, %v1888
    %v1891 = vmul.f32 %v606, %v1889
    %v1892 = vmul.f32 %v611, %v1889
    %v1893 = vmul.f32 %v616, %v1889
    %v1894 = vmul.f32 %v621, %v1889
    %v1895 = vmul.f32 %v626, %v1889
    %v1896 = vmul.f32 %v631, %v1889
    %v1897 = vmul.f32 %v636, %v1889
    %v1898 = vmul.f32 %v641, %v1889
    %v1899 = vmul.f32 %v646, %v1889
    %v1900 = vmul.f32 %v651, %v1889
    %v1901 = vmul.f32 %v656, %v1889
    %v1902 = vmul.f32 %v661, %v1889
    %v1903 = vmul.f32 %v666, %v1889
    %v1904 = vmul.f32 %v671, %v1889
    %v1905 = vmul.f32 %v676, %v1889
    %v1906 = vmul.f32 %v681, %v1889
    %v1907 = vmul.f32 %v686, %v1889
    %v1908 = vmul.f32 %v691, %v1889
    %v1909 = vmul.f32 %v696, %v1889
    %v1910 = vmul.f32 %v701, %v1889
    %v1911 = vmul.f32 %v706, %v1889
    %v1912 = vmul.f32 %v711, %v1889
    %v1913 = vmul.f32 %v716, %v1889
    %v1914 = vmul.f32 %v721, %v1889
    %v1915 = vmul.f32 %v726, %v1889
    %v1916 = vmul.f32 %v731, %v1889
    %v1917 = vmul.f32 %v736, %v1889
    %v1918 = vmul.f32 %v741, %v1889
    %v1919 = vmul.f32 %v746, %v1889
    %v1920 = vmul.f32 %v751, %v1889
    %v1921 = vmul.f32 %v756, %v1889
    %v1922 = vmul.f32 %v761, %v1889
    %v1923 = vmul.f32 %v766, %v1889
    %v1924 = vmul.f32 %v771, %v1889
    %v1925 = vmul.f32 %v776, %v1889
    %v1926 = vmul.f32 %v781, %v1889
    %v1927 = vmul.f32 %v786, %v1889
    %v1928 = vmul.f32 %v791, %v1889
    %v1929 = vmul.f32 %v796, %v1889
    %v1930 = vmul.f32 %v801, %v1889
    %v1931 = vmul.f32 %v806, %v1889
    %v1932 = vmul.f32 %v811, %v1889
    %v1933 = vmul.f32 %v816, %v1889
    %v1934 = vmul.f32 %v821, %v1889
    %v1935 = vmul.f32 %v826, %v1889
    %v1936 = vmul.f32 %v831, %v1889
    %v1937 = vmul.f32 %v836, %v1889
    %v1938 = vmul.f32 %v841, %v1889
    %v1939 = vmul.f32 %v846, %v1889
    %v1940 = vmul.f32 %v851, %v1889
    %v1941 = vmul.f32 %v856, %v1889
    %v1942 = vmul.f32 %v861, %v1889
    %v1943 = vmul.f32 %v866, %v1889
    %v1944 = vmul.f32 %v871, %v1889
    %v1945 = vmul.f32 %v876, %v1889
    %v1946 = vmul.f32 %v881, %v1889
    %v1947 = vmul.f32 %v886, %v1889
    %v1948 = vmul.f32 %v891, %v1889
    %v1949 = vmul.f32 %v896, %v1889
    %v1950 = vmul.f32 %v901, %v1889
    %v1951 = vmul.f32 %v906, %v1889
    %v1952 = vmul.f32 %v911, %v1889
    %v1953 = vmul.f32 %v916, %v1889
    %v1954 = vmul.f32 %v921, %v1889
    %v1955 = vmul.f32 %v926, %v1889
    %v1956 = vmul.f32 %v931, %v1889
    %v1957 = vmul.f32 %v936, %v1889
    %v1958 = vmul.f32 %v941, %v1889
    %v1959 = vmul.f32 %v946, %v1889
    %v1960 = vmul.f32 %v951, %v1889
    %v1961 = vmul.f32 %v956, %v1889
    %v1962 = vmul.f32 %v961, %v1889
    %v1963 = vmul.f32 %v966, %v1889
    %v1964 = vmul.f32 %v971, %v1889
    %v1965 = vmul.f32 %v976, %v1889
    %v1966 = vmul.f32 %v981, %v1889
    %v1967 = vmul.f32 %v986, %v1889
    %v1968 = vmul.f32 %v991, %v1889
    %v1969 = vmul.f32 %v996, %v1889
    %v1970 = vmul.f32 %v1001, %v1889
    %v1971 = vmul.f32 %v1006, %v1889
    %v1972 = vmul.f32 %v1011, %v1889
    %v1973 = vmul.f32 %v1016, %v1889
    %v1974 = vmul.f32 %v1021, %v1889
    %v1975 = vmul.f32 %v1026, %v1889
    %v1976 = vmul.f32 %v1031, %v1889
    %v1977 = vmul.f32 %v1036, %v1889
    %v1978 = vmul.f32 %v1041, %v1889
    %v1979 = vmul.f32 %v1046, %v1889
    %v1980 = vmul.f32 %v1051, %v1889
    %v1981 = vmul.f32 %v1056, %v1889
    %v1982 = vmul.f32 %v1061, %v1889
    %v1983 = vmul.f32 %v1066, %v1889
    %v1984 = vmul.f32 %v1071, %v1889
    %v1985 = vmul.f32 %v1076, %v1889
    %v1986 = vmul.f32 %v1081, %v1889
    %v1987 = vmul.f32 %v1086, %v1889
    %v1988 = vmul.f32 %v1091, %v1889
    %v1989 = vmul.f32 %v1096, %v1889
    %v1990 = vmul.f32 %v1101, %v1889
    %v1991 = vmul.f32 %v1106, %v1889
    %v1992 = vmul.f32 %v1111, %v1889
    %v1993 = vmul.f32 %v1116, %v1889
    %v1994 = vmul.f32 %v1121, %v1889
    %v1995 = vmul.f32 %v1126, %v1889
    %v1996 = vmul.f32 %v1131, %v1889
    %v1997 = vmul.f32 %v1136, %v1889
    %v1998 = vmul.f32 %v1141, %v1889
    %v1999 = vmul.f32 %v1146, %v1889
    %v2000 = vmul.f32 %v1151, %v1889
    %v2001 = vmul.f32 %v1156, %v1889
    %v2002 = vmul.f32 %v1161, %v1889
    %v2003 = vmul.f32 %v1166, %v1889
    %v2004 = vmul.f32 %v1171, %v1889
    %v2005 = vmul.f32 %v1176, %v1889
    %v2006 = vmul.f32 %v1181, %v1889
    %v2007 = vmul.f32 %v1186, %v1889
    %v2008 = vmul.f32 %v1191, %v1889
    %v2009 = vmul.f32 %v1196, %v1889
    %v2010 = vmul.f32 %v1201, %v1889
    %v2011 = vmul.f32 %v1206, %v1889
    %v2012 = vmul.f32 %v1211, %v1889
    %v2013 = vmul.f32 %v1216, %v1889
    %v2014 = vmul.f32 %v1221, %v1889
    %v2015 = vmul.f32 %v1226, %v1889
    %v2016 = vmul.f32 %v1231, %v1889
    %v2017 = vmul.f32 %v1236, %v1889
    %v2018 = vmul.f32 %v1241, %v1889
    %2019 = vadd.xlane.f32.xlu0 %v1891
    %v2020 = vpop.xlane.xlu0 %2019
    %2021 = vadd.xlane.f32.xlu0 %v1892
    %v2022 = vpop.xlane.xlu0 %2021
    %2023 = vadd.xlane.f32.xlu0 %v1893
    %v2024 = vpop.xlane.xlu0 %2023
    %2025 = vadd.xlane.f32.xlu0 %v1894
    %v2026 = vpop.xlane.xlu0 %2025
    %2027 = vadd.xlane.f32.xlu0 %v1895
    %v2028 = vpop.xlane.xlu0 %2027
    %2029 = vadd.xlane.f32.xlu0 %v1896
    %v2030 = vpop.xlane.xlu0 %2029
    %2031 = vadd.xlane.f32.xlu0 %v1897
    %v2032 = vpop.xlane.xlu0 %2031
    %2033 = vadd.xlane.f32.xlu0 %v1898
    %v2034 = vpop.xlane.xlu0 %2033
    %2035 = vadd.xlane.f32.xlu0 %v1899
    %v2036 = vpop.xlane.xlu0 %2035
    %2037 = vadd.xlane.f32.xlu0 %v1900
    %v2038 = vpop.xlane.xlu0 %2037
    %2039 = vadd.xlane.f32.xlu0 %v1901
    %v2040 = vpop.xlane.xlu0 %2039
    %2041 = vadd.xlane.f32.xlu0 %v1902
    %v2042 = vpop.xlane.xlu0 %2041
    %2043 = vadd.xlane.f32.xlu0 %v1903
    %v2044 = vpop.xlane.xlu0 %2043
    %2045 = vadd.xlane.f32.xlu0 %v1904
    %v2046 = vpop.xlane.xlu0 %2045
    %2047 = vadd.xlane.f32.xlu0 %v1905
    %v2048 = vpop.xlane.xlu0 %2047
    %2049 = vadd.xlane.f32.xlu0 %v1906
    %v2050 = vpop.xlane.xlu0 %2049
    %2051 = vadd.xlane.f32.xlu0 %v1907
    %v2052 = vpop.xlane.xlu0 %2051
    %2053 = vadd.xlane.f32.xlu0 %v1908
    %v2054 = vpop.xlane.xlu0 %2053
    %2055 = vadd.xlane.f32.xlu0 %v1909
    %v2056 = vpop.xlane.xlu0 %2055
    %2057 = vadd.xlane.f32.xlu0 %v1910
    %v2058 = vpop.xlane.xlu0 %2057
    %2059 = vadd.xlane.f32.xlu0 %v1911
    %v2060 = vpop.xlane.xlu0 %2059
    %2061 = vadd.xlane.f32.xlu0 %v1912
    %v2062 = vpop.xlane.xlu0 %2061
    %2063 = vadd.xlane.f32.xlu0 %v1913
    %v2064 = vpop.xlane.xlu0 %2063
    %2065 = vadd.xlane.f32.xlu0 %v1914
    %v2066 = vpop.xlane.xlu0 %2065
    %2067 = vadd.xlane.f32.xlu0 %v1915
    %v2068 = vpop.xlane.xlu0 %2067
    %2069 = vadd.xlane.f32.xlu0 %v1916
    %v2070 = vpop.xlane.xlu0 %2069
    %2071 = vadd.xlane.f32.xlu0 %v1917
    %v2072 = vpop.xlane.xlu0 %2071
    %2073 = vadd.xlane.f32.xlu0 %v1918
    %v2074 = vpop.xlane.xlu0 %2073
    %2075 = vadd.xlane.f32.xlu0 %v1919
    %v2076 = vpop.xlane.xlu0 %2075
    %2077 = vadd.xlane.f32.xlu0 %v1920
    %v2078 = vpop.xlane.xlu0 %2077
    %2079 = vadd.xlane.f32.xlu0 %v1921
    %v2080 = vpop.xlane.xlu0 %2079
    %2081 = vadd.xlane.f32.xlu0 %v1922
    %v2082 = vpop.xlane.xlu0 %2081
    %2083 = vadd.xlane.f32.xlu0 %v1923
    %v2084 = vpop.xlane.xlu0 %2083
    %2085 = vadd.xlane.f32.xlu0 %v1924
    %v2086 = vpop.xlane.xlu0 %2085
    %2087 = vadd.xlane.f32.xlu0 %v1925
    %v2088 = vpop.xlane.xlu0 %2087
    %2089 = vadd.xlane.f32.xlu0 %v1926
    %v2090 = vpop.xlane.xlu0 %2089
    %2091 = vadd.xlane.f32.xlu0 %v1927
    %v2092 = vpop.xlane.xlu0 %2091
    %2093 = vadd.xlane.f32.xlu0 %v1928
    %v2094 = vpop.xlane.xlu0 %2093
    %2095 = vadd.xlane.f32.xlu0 %v1929
    %v2096 = vpop.xlane.xlu0 %2095
    %2097 = vadd.xlane.f32.xlu0 %v1930
    %v2098 = vpop.xlane.xlu0 %2097
    %2099 = vadd.xlane.f32.xlu0 %v1931
    %v2100 = vpop.xlane.xlu0 %2099
    %2101 = vadd.xlane.f32.xlu0 %v1932
    %v2102 = vpop.xlane.xlu0 %2101
    %2103 = vadd.xlane.f32.xlu0 %v1933
    %v2104 = vpop.xlane.xlu0 %2103
    %2105 = vadd.xlane.f32.xlu0 %v1934
    %v2106 = vpop.xlane.xlu0 %2105
    %2107 = vadd.xlane.f32.xlu0 %v1935
    %v2108 = vpop.xlane.xlu0 %2107
    %2109 = vadd.xlane.f32.xlu0 %v1936
    %v2110 = vpop.xlane.xlu0 %2109
    %2111 = vadd.xlane.f32.xlu0 %v1937
    %v2112 = vpop.xlane.xlu0 %2111
    %2113 = vadd.xlane.f32.xlu0 %v1938
    %v2114 = vpop.xlane.xlu0 %2113
    %2115 = vadd.xlane.f32.xlu0 %v1939
    %v2116 = vpop.xlane.xlu0 %2115
    %2117 = vadd.xlane.f32.xlu0 %v1940
    %v2118 = vpop.xlane.xlu0 %2117
    %2119 = vadd.xlane.f32.xlu0 %v1941
    %v2120 = vpop.xlane.xlu0 %2119
    %2121 = vadd.xlane.f32.xlu0 %v1942
    %v2122 = vpop.xlane.xlu0 %2121
    %2123 = vadd.xlane.f32.xlu0 %v1943
    %v2124 = vpop.xlane.xlu0 %2123
    %2125 = vadd.xlane.f32.xlu0 %v1944
    %v2126 = vpop.xlane.xlu0 %2125
    %2127 = vadd.xlane.f32.xlu0 %v1945
    %v2128 = vpop.xlane.xlu0 %2127
    %2129 = vadd.xlane.f32.xlu0 %v1946
    %v2130 = vpop.xlane.xlu0 %2129
    %2131 = vadd.xlane.f32.xlu0 %v1947
    %v2132 = vpop.xlane.xlu0 %2131
    %2133 = vadd.xlane.f32.xlu0 %v1948
    %v2134 = vpop.xlane.xlu0 %2133
    %2135 = vadd.xlane.f32.xlu0 %v1949
    %v2136 = vpop.xlane.xlu0 %2135
    %2137 = vadd.xlane.f32.xlu0 %v1950
    %v2138 = vpop.xlane.xlu0 %2137
    %2139 = vadd.xlane.f32.xlu0 %v1951
    %v2140 = vpop.xlane.xlu0 %2139
    %2141 = vadd.xlane.f32.xlu0 %v1952
    %v2142 = vpop.xlane.xlu0 %2141
    %2143 = vadd.xlane.f32.xlu0 %v1953
    %v2144 = vpop.xlane.xlu0 %2143
    %2145 = vadd.xlane.f32.xlu0 %v1954
    %v2146 = vpop.xlane.xlu0 %2145
    %2147 = vadd.xlane.f32.xlu0 %v1955
    %v2148 = vpop.xlane.xlu0 %2147
    %2149 = vadd.xlane.f32.xlu0 %v1956
    %v2150 = vpop.xlane.xlu0 %2149
    %2151 = vadd.xlane.f32.xlu0 %v1957
    %v2152 = vpop.xlane.xlu0 %2151
    %2153 = vadd.xlane.f32.xlu0 %v1958
    %v2154 = vpop.xlane.xlu0 %2153
    %2155 = vadd.xlane.f32.xlu0 %v1959
    %v2156 = vpop.xlane.xlu0 %2155
    %2157 = vadd.xlane.f32.xlu0 %v1960
    %v2158 = vpop.xlane.xlu0 %2157
    %2159 = vadd.xlane.f32.xlu0 %v1961
    %v2160 = vpop.xlane.xlu0 %2159
    %2161 = vadd.xlane.f32.xlu0 %v1962
    %v2162 = vpop.xlane.xlu0 %2161
    %2163 = vadd.xlane.f32.xlu0 %v1963
    %v2164 = vpop.xlane.xlu0 %2163
    %2165 = vadd.xlane.f32.xlu0 %v1964
    %v2166 = vpop.xlane.xlu0 %2165
    %2167 = vadd.xlane.f32.xlu0 %v1965
    %v2168 = vpop.xlane.xlu0 %2167
    %2169 = vadd.xlane.f32.xlu0 %v1966
    %v2170 = vpop.xlane.xlu0 %2169
    %2171 = vadd.xlane.f32.xlu0 %v1967
    %v2172 = vpop.xlane.xlu0 %2171
    %2173 = vadd.xlane.f32.xlu0 %v1968
    %v2174 = vpop.xlane.xlu0 %2173
    %2175 = vadd.xlane.f32.xlu0 %v1969
    %v2176 = vpop.xlane.xlu0 %2175
    %2177 = vadd.xlane.f32.xlu0 %v1970
    %v2178 = vpop.xlane.xlu0 %2177
    %2179 = vadd.xlane.f32.xlu0 %v1971
    %v2180 = vpop.xlane.xlu0 %2179
    %2181 = vadd.xlane.f32.xlu0 %v1972
    %v2182 = vpop.xlane.xlu0 %2181
    %2183 = vadd.xlane.f32.xlu0 %v1973
    %v2184 = vpop.xlane.xlu0 %2183
    %2185 = vadd.xlane.f32.xlu0 %v1974
    %v2186 = vpop.xlane.xlu0 %2185
    %2187 = vadd.xlane.f32.xlu0 %v1975
    %v2188 = vpop.xlane.xlu0 %2187
    %2189 = vadd.xlane.f32.xlu0 %v1976
    %v2190 = vpop.xlane.xlu0 %2189
    %2191 = vadd.xlane.f32.xlu0 %v1977
    %v2192 = vpop.xlane.xlu0 %2191
    %2193 = vadd.xlane.f32.xlu0 %v1978
    %v2194 = vpop.xlane.xlu0 %2193
    %2195 = vadd.xlane.f32.xlu0 %v1979
    %v2196 = vpop.xlane.xlu0 %2195
    %2197 = vadd.xlane.f32.xlu0 %v1980
    %v2198 = vpop.xlane.xlu0 %2197
    %2199 = vadd.xlane.f32.xlu0 %v1981
    %v2200 = vpop.xlane.xlu0 %2199
    %2201 = vadd.xlane.f32.xlu0 %v1982
    %v2202 = vpop.xlane.xlu0 %2201
    %2203 = vadd.xlane.f32.xlu0 %v1983
    %v2204 = vpop.xlane.xlu0 %2203
    %2205 = vadd.xlane.f32.xlu0 %v1984
    %v2206 = vpop.xlane.xlu0 %2205
    %2207 = vadd.xlane.f32.xlu0 %v1985
    %v2208 = vpop.xlane.xlu0 %2207
    %2209 = vadd.xlane.f32.xlu0 %v1986
    %v2210 = vpop.xlane.xlu0 %2209
    %2211 = vadd.xlane.f32.xlu0 %v1987
    %v2212 = vpop.xlane.xlu0 %2211
    %2213 = vadd.xlane.f32.xlu0 %v1988
    %v2214 = vpop.xlane.xlu0 %2213
    %2215 = vadd.xlane.f32.xlu0 %v1989
    %v2216 = vpop.xlane.xlu0 %2215
    %2217 = vadd.xlane.f32.xlu0 %v1990
    %v2218 = vpop.xlane.xlu0 %2217
    %2219 = vadd.xlane.f32.xlu0 %v1991
    %v2220 = vpop.xlane.xlu0 %2219
    %2221 = vadd.xlane.f32.xlu0 %v1992
    %v2222 = vpop.xlane.xlu0 %2221
    %2223 = vadd.xlane.f32.xlu0 %v1993
    %v2224 = vpop.xlane.xlu0 %2223
    %2225 = vadd.xlane.f32.xlu0 %v1994
    %v2226 = vpop.xlane.xlu0 %2225
    %2227 = vadd.xlane.f32.xlu0 %v1995
    %v2228 = vpop.xlane.xlu0 %2227
    %2229 = vadd.xlane.f32.xlu0 %v1996
    %v2230 = vpop.xlane.xlu0 %2229
    %2231 = vadd.xlane.f32.xlu0 %v1997
    %v2232 = vpop.xlane.xlu0 %2231
    %2233 = vadd.xlane.f32.xlu0 %v1998
    %v2234 = vpop.xlane.xlu0 %2233
    %2235 = vadd.xlane.f32.xlu0 %v1999
    %v2236 = vpop.xlane.xlu0 %2235
    %2237 = vadd.xlane.f32.xlu0 %v2000
    %v2238 = vpop.xlane.xlu0 %2237
    %2239 = vadd.xlane.f32.xlu0 %v2001
    %v2240 = vpop.xlane.xlu0 %2239
    %2241 = vadd.xlane.f32.xlu0 %v2002
    %v2242 = vpop.xlane.xlu0 %2241
    %2243 = vadd.xlane.f32.xlu0 %v2003
    %v2244 = vpop.xlane.xlu0 %2243
    %2245 = vadd.xlane.f32.xlu0 %v2004
    %v2246 = vpop.xlane.xlu0 %2245
    %2247 = vadd.xlane.f32.xlu0 %v2005
    %v2248 = vpop.xlane.xlu0 %2247
    %2249 = vadd.xlane.f32.xlu0 %v2006
    %v2250 = vpop.xlane.xlu0 %2249
    %2251 = vadd.xlane.f32.xlu0 %v2007
    %v2252 = vpop.xlane.xlu0 %2251
    %2253 = vadd.xlane.f32.xlu0 %v2008
    %v2254 = vpop.xlane.xlu0 %2253
    %2255 = vadd.xlane.f32.xlu0 %v2009
    %v2256 = vpop.xlane.xlu0 %2255
    %2257 = vadd.xlane.f32.xlu0 %v2010
    %v2258 = vpop.xlane.xlu0 %2257
    %2259 = vadd.xlane.f32.xlu0 %v2011
    %v2260 = vpop.xlane.xlu0 %2259
    %2261 = vadd.xlane.f32.xlu0 %v2012
    %v2262 = vpop.xlane.xlu0 %2261
    %2263 = vadd.xlane.f32.xlu0 %v2013
    %v2264 = vpop.xlane.xlu0 %2263
    %2265 = vadd.xlane.f32.xlu0 %v2014
    %v2266 = vpop.xlane.xlu0 %2265
    %2267 = vadd.xlane.f32.xlu0 %v2015
    %v2268 = vpop.xlane.xlu0 %2267
    %2269 = vadd.xlane.f32.xlu0 %v2016
    %v2270 = vpop.xlane.xlu0 %2269
    %2271 = vadd.xlane.f32.xlu0 %v2017
    %v2272 = vpop.xlane.xlu0 %2271
    %2273 = vadd.xlane.f32.xlu0 %v2018
    %v2274 = vpop.xlane.xlu0 %2273
    %vm2275 = vcmask 7168
    %2276 = vst.msk [vmem:[%s5] sm:$0xff] %vm2275, %v2020
    %2277 = vst.msk [vmem:[%s5 + $0x8] sm:$0xff] %vm2275, %v2022
    %2278 = vst.msk [vmem:[%s5 + $0x10] sm:$0xff] %vm2275, %v2024
    %2279 = vst.msk [vmem:[%s5 + $0x18] sm:$0xff] %vm2275, %v2026
    %2280 = vst.msk [vmem:[%s5 + $0x20] sm:$0xff] %vm2275, %v2028
    %2281 = vst.msk [vmem:[%s5 + $0x28] sm:$0xff] %vm2275, %v2030
    %2282 = vst.msk [vmem:[%s5 + $0x30] sm:$0xff] %vm2275, %v2032
    %2283 = vst.msk [vmem:[%s5 + $0x38] sm:$0xff] %vm2275, %v2034
    %2284 = vst.msk [vmem:[%s5 + $0x40] sm:$0xff] %vm2275, %v2036
    %2285 = vst.msk [vmem:[%s5 + $0x48] sm:$0xff] %vm2275, %v2038
    %2286 = vst.msk [vmem:[%s5 + $0x50] sm:$0xff] %vm2275, %v2040
    %2287 = vst.msk [vmem:[%s5 + $0x58] sm:$0xff] %vm2275, %v2042
    %2288 = vst.msk [vmem:[%s5 + $0x60] sm:$0xff] %vm2275, %v2044
    %2289 = vst.msk [vmem:[%s5 + $0x68] sm:$0xff] %vm2275, %v2046
    %2290 = vst.msk [vmem:[%s5 + $0x70] sm:$0xff] %vm2275, %v2048
    %2291 = vst.msk [vmem:[%s5 + $0x78] sm:$0xff] %vm2275, %v2050
    %2292 = vst.msk [vmem:[%s5 + $0x80] sm:$0xff] %vm2275, %v2052
    %2293 = vst.msk [vmem:[%s5 + $0x88] sm:$0xff] %vm2275, %v2054
    %2294 = vst.msk [vmem:[%s5 + $0x90] sm:$0xff] %vm2275, %v2056
    %2295 = vst.msk [vmem:[%s5 + $0x98] sm:$0xff] %vm2275, %v2058
    %2296 = vst.msk [vmem:[%s5 + $0xa0] sm:$0xff] %vm2275, %v2060
    %2297 = vst.msk [vmem:[%s5 + $0xa8] sm:$0xff] %vm2275, %v2062
    %2298 = vst.msk [vmem:[%s5 + $0xb0] sm:$0xff] %vm2275, %v2064
    %2299 = vst.msk [vmem:[%s5 + $0xb8] sm:$0xff] %vm2275, %v2066
    %2300 = vst.msk [vmem:[%s5 + $0xc0] sm:$0xff] %vm2275, %v2068
    %2301 = vst.msk [vmem:[%s5 + $0xc8] sm:$0xff] %vm2275, %v2070
    %2302 = vst.msk [vmem:[%s5 + $0xd0] sm:$0xff] %vm2275, %v2072
    %2303 = vst.msk [vmem:[%s5 + $0xd8] sm:$0xff] %vm2275, %v2074
    %2304 = vst.msk [vmem:[%s5 + $0xe0] sm:$0xff] %vm2275, %v2076
    %2305 = vst.msk [vmem:[%s5 + $0xe8] sm:$0xff] %vm2275, %v2078
    %2306 = vst.msk [vmem:[%s5 + $0xf0] sm:$0xff] %vm2275, %v2080
    %2307 = vst.msk [vmem:[%s5 + $0xf8] sm:$0xff] %vm2275, %v2082
    %2308 = vst.msk [vmem:[%s5 + $0x100] sm:$0xff] %vm2275, %v2084
    %2309 = vst.msk [vmem:[%s5 + $0x108] sm:$0xff] %vm2275, %v2086
    %2310 = vst.msk [vmem:[%s5 + $0x110] sm:$0xff] %vm2275, %v2088
    %2311 = vst.msk [vmem:[%s5 + $0x118] sm:$0xff] %vm2275, %v2090
    %2312 = vst.msk [vmem:[%s5 + $0x120] sm:$0xff] %vm2275, %v2092
    %2313 = vst.msk [vmem:[%s5 + $0x128] sm:$0xff] %vm2275, %v2094
    %2314 = vst.msk [vmem:[%s5 + $0x130] sm:$0xff] %vm2275, %v2096
    %2315 = vst.msk [vmem:[%s5 + $0x138] sm:$0xff] %vm2275, %v2098
    %2316 = vst.msk [vmem:[%s5 + $0x140] sm:$0xff] %vm2275, %v2100
    %2317 = vst.msk [vmem:[%s5 + $0x148] sm:$0xff] %vm2275, %v2102
    %2318 = vst.msk [vmem:[%s5 + $0x150] sm:$0xff] %vm2275, %v2104
    %2319 = vst.msk [vmem:[%s5 + $0x158] sm:$0xff] %vm2275, %v2106
    %2320 = vst.msk [vmem:[%s5 + $0x160] sm:$0xff] %vm2275, %v2108
    %2321 = vst.msk [vmem:[%s5 + $0x168] sm:$0xff] %vm2275, %v2110
    %2322 = vst.msk [vmem:[%s5 + $0x170] sm:$0xff] %vm2275, %v2112
    %2323 = vst.msk [vmem:[%s5 + $0x178] sm:$0xff] %vm2275, %v2114
    %2324 = vst.msk [vmem:[%s5 + $0x180] sm:$0xff] %vm2275, %v2116
    %2325 = vst.msk [vmem:[%s5 + $0x188] sm:$0xff] %vm2275, %v2118
    %2326 = vst.msk [vmem:[%s5 + $0x190] sm:$0xff] %vm2275, %v2120
    %2327 = vst.msk [vmem:[%s5 + $0x198] sm:$0xff] %vm2275, %v2122
    %2328 = vst.msk [vmem:[%s5 + $0x1a0] sm:$0xff] %vm2275, %v2124
    %2329 = vst.msk [vmem:[%s5 + $0x1a8] sm:$0xff] %vm2275, %v2126
    %2330 = vst.msk [vmem:[%s5 + $0x1b0] sm:$0xff] %vm2275, %v2128
    %2331 = vst.msk [vmem:[%s5 + $0x1b8] sm:$0xff] %vm2275, %v2130
    %2332 = vst.msk [vmem:[%s5 + $0x1c0] sm:$0xff] %vm2275, %v2132
    %2333 = vst.msk [vmem:[%s5 + $0x1c8] sm:$0xff] %vm2275, %v2134
    %2334 = vst.msk [vmem:[%s5 + $0x1d0] sm:$0xff] %vm2275, %v2136
    %2335 = vst.msk [vmem:[%s5 + $0x1d8] sm:$0xff] %vm2275, %v2138
    %2336 = vst.msk [vmem:[%s5 + $0x1e0] sm:$0xff] %vm2275, %v2140
    %2337 = vst.msk [vmem:[%s5 + $0x1e8] sm:$0xff] %vm2275, %v2142
    %2338 = vst.msk [vmem:[%s5 + $0x1f0] sm:$0xff] %vm2275, %v2144
    %2339 = vst.msk [vmem:[%s5 + $0x1f8] sm:$0xff] %vm2275, %v2146
    %2340 = vst.msk [vmem:[%s5 + $0x200] sm:$0xff] %vm2275, %v2148
    %2341 = vst.msk [vmem:[%s5 + $0x208] sm:$0xff] %vm2275, %v2150
    %2342 = vst.msk [vmem:[%s5 + $0x210] sm:$0xff] %vm2275, %v2152
    %2343 = vst.msk [vmem:[%s5 + $0x218] sm:$0xff] %vm2275, %v2154
    %2344 = vst.msk [vmem:[%s5 + $0x220] sm:$0xff] %vm2275, %v2156
    %2345 = vst.msk [vmem:[%s5 + $0x228] sm:$0xff] %vm2275, %v2158
    %2346 = vst.msk [vmem:[%s5 + $0x230] sm:$0xff] %vm2275, %v2160
    %2347 = vst.msk [vmem:[%s5 + $0x238] sm:$0xff] %vm2275, %v2162
    %2348 = vst.msk [vmem:[%s5 + $0x240] sm:$0xff] %vm2275, %v2164
    %2349 = vst.msk [vmem:[%s5 + $0x248] sm:$0xff] %vm2275, %v2166
    %2350 = vst.msk [vmem:[%s5 + $0x250] sm:$0xff] %vm2275, %v2168
    %2351 = vst.msk [vmem:[%s5 + $0x258] sm:$0xff] %vm2275, %v2170
    %2352 = vst.msk [vmem:[%s5 + $0x260] sm:$0xff] %vm2275, %v2172
    %2353 = vst.msk [vmem:[%s5 + $0x268] sm:$0xff] %vm2275, %v2174
    %2354 = vst.msk [vmem:[%s5 + $0x270] sm:$0xff] %vm2275, %v2176
    %2355 = vst.msk [vmem:[%s5 + $0x278] sm:$0xff] %vm2275, %v2178
    %2356 = vst.msk [vmem:[%s5 + $0x280] sm:$0xff] %vm2275, %v2180
    %2357 = vst.msk [vmem:[%s5 + $0x288] sm:$0xff] %vm2275, %v2182
    %2358 = vst.msk [vmem:[%s5 + $0x290] sm:$0xff] %vm2275, %v2184
    %2359 = vst.msk [vmem:[%s5 + $0x298] sm:$0xff] %vm2275, %v2186
    %2360 = vst.msk [vmem:[%s5 + $0x2a0] sm:$0xff] %vm2275, %v2188
    %2361 = vst.msk [vmem:[%s5 + $0x2a8] sm:$0xff] %vm2275, %v2190
    %2362 = vst.msk [vmem:[%s5 + $0x2b0] sm:$0xff] %vm2275, %v2192
    %2363 = vst.msk [vmem:[%s5 + $0x2b8] sm:$0xff] %vm2275, %v2194
    %2364 = vst.msk [vmem:[%s5 + $0x2c0] sm:$0xff] %vm2275, %v2196
    %2365 = vst.msk [vmem:[%s5 + $0x2c8] sm:$0xff] %vm2275, %v2198
    %2366 = vst.msk [vmem:[%s5 + $0x2d0] sm:$0xff] %vm2275, %v2200
    %2367 = vst.msk [vmem:[%s5 + $0x2d8] sm:$0xff] %vm2275, %v2202
    %2368 = vst.msk [vmem:[%s5 + $0x2e0] sm:$0xff] %vm2275, %v2204
    %2369 = vst.msk [vmem:[%s5 + $0x2e8] sm:$0xff] %vm2275, %v2206
    %2370 = vst.msk [vmem:[%s5 + $0x2f0] sm:$0xff] %vm2275, %v2208
    %2371 = vst.msk [vmem:[%s5 + $0x2f8] sm:$0xff] %vm2275, %v2210
    %2372 = vst.msk [vmem:[%s5 + $0x300] sm:$0xff] %vm2275, %v2212
    %2373 = vst.msk [vmem:[%s5 + $0x308] sm:$0xff] %vm2275, %v2214
    %2374 = vst.msk [vmem:[%s5 + $0x310] sm:$0xff] %vm2275, %v2216
    %2375 = vst.msk [vmem:[%s5 + $0x318] sm:$0xff] %vm2275, %v2218
    %2376 = vst.msk [vmem:[%s5 + $0x320] sm:$0xff] %vm2275, %v2220
    %2377 = vst.msk [vmem:[%s5 + $0x328] sm:$0xff] %vm2275, %v2222
    %2378 = vst.msk [vmem:[%s5 + $0x330] sm:$0xff] %vm2275, %v2224
    %2379 = vst.msk [vmem:[%s5 + $0x338] sm:$0xff] %vm2275, %v2226
    %2380 = vst.msk [vmem:[%s5 + $0x340] sm:$0xff] %vm2275, %v2228
    %2381 = vst.msk [vmem:[%s5 + $0x348] sm:$0xff] %vm2275, %v2230
    %2382 = vst.msk [vmem:[%s5 + $0x350] sm:$0xff] %vm2275, %v2232
    %2383 = vst.msk [vmem:[%s5 + $0x358] sm:$0xff] %vm2275, %v2234
    %2384 = vst.msk [vmem:[%s5 + $0x360] sm:$0xff] %vm2275, %v2236
    %2385 = vst.msk [vmem:[%s5 + $0x368] sm:$0xff] %vm2275, %v2238
    %2386 = vst.msk [vmem:[%s5 + $0x370] sm:$0xff] %vm2275, %v2240
    %2387 = vst.msk [vmem:[%s5 + $0x378] sm:$0xff] %vm2275, %v2242
    %2388 = vst.msk [vmem:[%s5 + $0x380] sm:$0xff] %vm2275, %v2244
    %2389 = vst.msk [vmem:[%s5 + $0x388] sm:$0xff] %vm2275, %v2246
    %2390 = vst.msk [vmem:[%s5 + $0x390] sm:$0xff] %vm2275, %v2248
    %2391 = vst.msk [vmem:[%s5 + $0x398] sm:$0xff] %vm2275, %v2250
    %2392 = vst.msk [vmem:[%s5 + $0x3a0] sm:$0xff] %vm2275, %v2252
    %2393 = vst.msk [vmem:[%s5 + $0x3a8] sm:$0xff] %vm2275, %v2254
    %2394 = vst.msk [vmem:[%s5 + $0x3b0] sm:$0xff] %vm2275, %v2256
    %2395 = vst.msk [vmem:[%s5 + $0x3b8] sm:$0xff] %vm2275, %v2258
    %2396 = vst.msk [vmem:[%s5 + $0x3c0] sm:$0xff] %vm2275, %v2260
    %2397 = vst.msk [vmem:[%s5 + $0x3c8] sm:$0xff] %vm2275, %v2262
    %2398 = vst.msk [vmem:[%s5 + $0x3d0] sm:$0xff] %vm2275, %v2264
    %2399 = vst.msk [vmem:[%s5 + $0x3d8] sm:$0xff] %vm2275, %v2266
    %2400 = vst.msk [vmem:[%s5 + $0x3e0] sm:$0xff] %vm2275, %v2268
    %2401 = vst.msk [vmem:[%s5 + $0x3e8] sm:$0xff] %vm2275, %v2270
    %2402 = vst.msk [vmem:[%s5 + $0x3f0] sm:$0xff] %vm2275, %v2272
    %2403 = vst.msk [vmem:[%s5 + $0x3f8] sm:$0xff] %vm2275, %v2274
    %v2404 = vld [vmem:[%s3] sm:$0x1]
    %2405 = vmatprep.subr.mxu0 0.0
    %2406 = vmatpush1.xpose.msra.mxu0 %v681
    %2407 = vmatprep.subr.mxu0 0.0
    %2408 = vmatpush1.xpose.msra.mxu0 %v676
    %2409 = vmatprep.subr.mxu0 0.0
    %2410 = vmatpush1.xpose.msra.mxu0 %v671
    %2411 = vmatprep.subr.mxu0 0.0
    %2412 = vmatpush1.xpose.msra.mxu0 %v666
    %2413 = vmatprep.subr.mxu0 0.0
    %2414 = vmatpush1.xpose.msra.mxu0 %v661
    %2415 = vmatprep.subr.mxu0 0.0
    %2416 = vmatpush1.xpose.msra.mxu0 %v656
    %2417 = vmatprep.subr.mxu0 0.0
    %2418 = vmatpush1.xpose.msra.mxu0 %v651
    %2419 = vmatprep.subr.mxu0 0.0
    %2420 = vmatpush1.xpose.msra.mxu0 %v646
    %2421 = vmatprep.subr.mxu0 0.0
    %2422 = vmatpush1.xpose.msra.mxu0 %v641
    %2423 = vmatprep.subr.mxu0 0.0
    %2424 = vmatpush1.xpose.msra.mxu0 %v636
    %2425 = vmatprep.subr.mxu0 0.0
    %2426 = vmatpush1.xpose.msra.mxu0 %v631
    %2427 = vmatprep.subr.mxu0 0.0
    %2428 = vmatpush1.xpose.msra.mxu0 %v626
    %2429 = vmatprep.subr.mxu0 0.0
    %2430 = vmatpush1.xpose.msra.mxu0 %v621
    %2431 = vmatprep.subr.mxu0 0.0
    %2432 = vmatpush1.xpose.msra.mxu0 %v616
    %2433 = vmatprep.subr.mxu0 0.0
    %2434 = vmatpush1.xpose.msra.mxu0 %v611
    %2435 = vmatprep.subr.mxu0 0.0
    %2436 = vmatpush1.xpose.msra.mxu0 %v606
    %2437 = vmatprep.subr.mxu0 0.0
    %2438 = vmatpush2.xpose.msra.mxu0 %v761
    %2439 = vmatprep.subr.mxu0 0.0
    %2440 = vmatpush2.xpose.msra.mxu0 %v756
    %2441 = vmatprep.subr.mxu0 0.0
    %2442 = vmatpush2.xpose.msra.mxu0 %v751
    %2443 = vmatprep.subr.mxu0 0.0
    %2444 = vmatpush2.xpose.msra.mxu0 %v746
    %2445 = vmatprep.subr.mxu0 0.0
    %2446 = vmatpush2.xpose.msra.mxu0 %v741
    %2447 = vmatprep.subr.mxu0 0.0
    %2448 = vmatpush2.xpose.msra.mxu0 %v736
    %2449 = vmatprep.subr.mxu0 0.0
    %2450 = vmatpush2.xpose.msra.mxu0 %v731
    %2451 = vmatprep.subr.mxu0 0.0
    %2452 = vmatpush2.xpose.msra.mxu0 %v726
    %2453 = vmatprep.subr.mxu0 0.0
    %2454 = vmatpush2.xpose.msra.mxu0 %v721
    %2455 = vmatprep.subr.mxu0 0.0
    %2456 = vmatpush2.xpose.msra.mxu0 %v716
    %2457 = vmatprep.subr.mxu0 0.0
    %2458 = vmatpush2.xpose.msra.mxu0 %v711
    %2459 = vmatprep.subr.mxu0 0.0
    %2460 = vmatpush2.xpose.msra.mxu0 %v706
    %2461 = vmatprep.subr.mxu0 0.0
    %2462 = vmatpush2.xpose.msra.mxu0 %v701
    %2463 = vmatprep.subr.mxu0 0.0
    %2464 = vmatpush2.xpose.msra.mxu0 %v696
    %2465 = vmatprep.subr.mxu0 0.0
    %2466 = vmatpush2.xpose.msra.mxu0 %v691
    %2467 = vmatprep.subr.mxu0 0.0
    %2468 = vmatpush2.xpose.msra.mxu0 %v686
    %2469 = vmatprep.mubr.f32.mxu0 0.0
    %2470 = vmatmul.mubr.f32.gmra.mxu0 %v2404
    %v2471 = vpop.f32.mrf.mxu0
    %v2472 = vadd.f32 0.0, %v2471
    %v2473 = vpop.f32.mrf.mxu0
    %v2474 = vadd.f32 0.0, %v2473
    %2475 = vdwg.mxu0
    %2476 = vmatprep.subr.mxu0 0.0
    %2477 = vmatpush1.xpose.msra.mxu0 %v841
    %2478 = vmatprep.subr.mxu0 0.0
    %2479 = vmatpush1.xpose.msra.mxu0 %v836
    %2480 = vmatprep.subr.mxu0 0.0
    %2481 = vmatpush1.xpose.msra.mxu0 %v831
    %2482 = vmatprep.subr.mxu0 0.0
    %2483 = vmatpush1.xpose.msra.mxu0 %v826
    %2484 = vmatprep.subr.mxu0 0.0
    %2485 = vmatpush1.xpose.msra.mxu0 %v821
    %2486 = vmatprep.subr.mxu0 0.0
    %2487 = vmatpush1.xpose.msra.mxu0 %v816
    %2488 = vmatprep.subr.mxu0 0.0
    %2489 = vmatpush1.xpose.msra.mxu0 %v811
    %2490 = vmatprep.subr.mxu0 0.0
    %2491 = vmatpush1.xpose.msra.mxu0 %v806
    %2492 = vmatprep.subr.mxu0 0.0
    %2493 = vmatpush1.xpose.msra.mxu0 %v801
    %2494 = vmatprep.subr.mxu0 0.0
    %2495 = vmatpush1.xpose.msra.mxu0 %v796
    %2496 = vmatprep.subr.mxu0 0.0
    %2497 = vmatpush1.xpose.msra.mxu0 %v791
    %2498 = vmatprep.subr.mxu0 0.0
    %2499 = vmatpush1.xpose.msra.mxu0 %v786
    %2500 = vmatprep.subr.mxu0 0.0
    %2501 = vmatpush1.xpose.msra.mxu0 %v781
    %2502 = vmatprep.subr.mxu0 0.0
    %2503 = vmatpush1.xpose.msra.mxu0 %v776
    %2504 = vmatprep.subr.mxu0 0.0
    %2505 = vmatpush1.xpose.msra.mxu0 %v771
    %2506 = vmatprep.subr.mxu0 0.0
    %2507 = vmatpush1.xpose.msra.mxu0 %v766
    %2508 = vmatprep.subr.mxu0 0.0
    %2509 = vmatpush2.xpose.msra.mxu0 %v921
    %2510 = vmatprep.subr.mxu0 0.0
    %2511 = vmatpush2.xpose.msra.mxu0 %v916
    %2512 = vmatprep.subr.mxu0 0.0
    %2513 = vmatpush2.xpose.msra.mxu0 %v911
    %2514 = vmatprep.subr.mxu0 0.0
    %2515 = vmatpush2.xpose.msra.mxu0 %v906
    %2516 = vmatprep.subr.mxu0 0.0
    %2517 = vmatpush2.xpose.msra.mxu0 %v901
    %2518 = vmatprep.subr.mxu0 0.0
    %2519 = vmatpush2.xpose.msra.mxu0 %v896
    %2520 = vmatprep.subr.mxu0 0.0
    %2521 = vmatpush2.xpose.msra.mxu0 %v891
    %2522 = vmatprep.subr.mxu0 0.0
    %2523 = vmatpush2.xpose.msra.mxu0 %v886
    %2524 = vmatprep.subr.mxu0 0.0
    %2525 = vmatpush2.xpose.msra.mxu0 %v881
    %2526 = vmatprep.subr.mxu0 0.0
    %2527 = vmatpush2.xpose.msra.mxu0 %v876
    %2528 = vmatprep.subr.mxu0 0.0
    %2529 = vmatpush2.xpose.msra.mxu0 %v871
    %2530 = vmatprep.subr.mxu0 0.0
    %2531 = vmatpush2.xpose.msra.mxu0 %v866
    %2532 = vmatprep.subr.mxu0 0.0
    %2533 = vmatpush2.xpose.msra.mxu0 %v861
    %2534 = vmatprep.subr.mxu0 0.0
    %2535 = vmatpush2.xpose.msra.mxu0 %v856
    %2536 = vmatprep.subr.mxu0 0.0
    %2537 = vmatpush2.xpose.msra.mxu0 %v851
    %2538 = vmatprep.subr.mxu0 0.0
    %2539 = vmatpush2.xpose.msra.mxu0 %v846
    %2540 = vmatprep.mubr.f32.mxu0 0.0
    %2541 = vmatmul.mubr.f32.gmra.mxu0 %v2404
    %v2542 = vpop.f32.mrf.mxu0
    %v2543 = vadd.f32 0.0, %v2542
    %v2544 = vpop.f32.mrf.mxu0
    %v2545 = vadd.f32 0.0, %v2544
    %2546 = vdwg.mxu0
    %2547 = vmatprep.subr.mxu0 0.0
    %2548 = vmatpush1.xpose.msra.mxu0 %v1001
    %2549 = vmatprep.subr.mxu0 0.0
    %2550 = vmatpush1.xpose.msra.mxu0 %v996
    %2551 = vmatprep.subr.mxu0 0.0
    %2552 = vmatpush1.xpose.msra.mxu0 %v991
    %2553 = vmatprep.subr.mxu0 0.0
    %2554 = vmatpush1.xpose.msra.mxu0 %v986
    %2555 = vmatprep.subr.mxu0 0.0
    %2556 = vmatpush1.xpose.msra.mxu0 %v981
    %2557 = vmatprep.subr.mxu0 0.0
    %2558 = vmatpush1.xpose.msra.mxu0 %v976
    %2559 = vmatprep.subr.mxu0 0.0
    %2560 = vmatpush1.xpose.msra.mxu0 %v971
    %2561 = vmatprep.subr.mxu0 0.0
    %2562 = vmatpush1.xpose.msra.mxu0 %v966
    %2563 = vmatprep.subr.mxu0 0.0
    %2564 = vmatpush1.xpose.msra.mxu0 %v961
    %2565 = vmatprep.subr.mxu0 0.0
    %2566 = vmatpush1.xpose.msra.mxu0 %v956
    %2567 = vmatprep.subr.mxu0 0.0
    %2568 = vmatpush1.xpose.msra.mxu0 %v951
    %2569 = vmatprep.subr.mxu0 0.0
    %2570 = vmatpush1.xpose.msra.mxu0 %v946
    %2571 = vmatprep.subr.mxu0 0.0
    %2572 = vmatpush1.xpose.msra.mxu0 %v941
    %2573 = vmatprep.subr.mxu0 0.0
    %2574 = vmatpush1.xpose.msra.mxu0 %v936
    %2575 = vmatprep.subr.mxu0 0.0
    %2576 = vmatpush1.xpose.msra.mxu0 %v931
    %2577 = vmatprep.subr.mxu0 0.0
    %2578 = vmatpush1.xpose.msra.mxu0 %v926
    %2579 = vmatprep.subr.mxu0 0.0
    %2580 = vmatpush2.xpose.msra.mxu0 %v1081
    %2581 = vmatprep.subr.mxu0 0.0
    %2582 = vmatpush2.xpose.msra.mxu0 %v1076
    %2583 = vmatprep.subr.mxu0 0.0
    %2584 = vmatpush2.xpose.msra.mxu0 %v1071
    %2585 = vmatprep.subr.mxu0 0.0
    %2586 = vmatpush2.xpose.msra.mxu0 %v1066
    %2587 = vmatprep.subr.mxu0 0.0
    %2588 = vmatpush2.xpose.msra.mxu0 %v1061
    %2589 = vmatprep.subr.mxu0 0.0
    %2590 = vmatpush2.xpose.msra.mxu0 %v1056
    %2591 = vmatprep.subr.mxu0 0.0
    %2592 = vmatpush2.xpose.msra.mxu0 %v1051
    %2593 = vmatprep.subr.mxu0 0.0
    %2594 = vmatpush2.xpose.msra.mxu0 %v1046
    %2595 = vmatprep.subr.mxu0 0.0
    %2596 = vmatpush2.xpose.msra.mxu0 %v1041
    %2597 = vmatprep.subr.mxu0 0.0
    %2598 = vmatpush2.xpose.msra.mxu0 %v1036
    %2599 = vmatprep.subr.mxu0 0.0
    %2600 = vmatpush2.xpose.msra.mxu0 %v1031
    %2601 = vmatprep.subr.mxu0 0.0
    %2602 = vmatpush2.xpose.msra.mxu0 %v1026
    %2603 = vmatprep.subr.mxu0 0.0
    %2604 = vmatpush2.xpose.msra.mxu0 %v1021
    %2605 = vmatprep.subr.mxu0 0.0
    %2606 = vmatpush2.xpose.msra.mxu0 %v1016
    %2607 = vmatprep.subr.mxu0 0.0
    %2608 = vmatpush2.xpose.msra.mxu0 %v1011
    %2609 = vmatprep.subr.mxu0 0.0
    %2610 = vmatpush2.xpose.msra.mxu0 %v1006
    %2611 = vmatprep.mubr.f32.mxu0 0.0
    %2612 = vmatmul.mubr.f32.gmra.mxu0 %v2404
    %v2613 = vpop.f32.mrf.mxu0
    %v2614 = vadd.f32 0.0, %v2613
    %v2615 = vpop.f32.mrf.mxu0
    %v2616 = vadd.f32 0.0, %v2615
    %2617 = vdwg.mxu0
    %2618 = vmatprep.subr.mxu0 0.0
    %2619 = vmatpush1.xpose.msra.mxu0 %v1161
    %2620 = vmatprep.subr.mxu0 0.0
    %2621 = vmatpush1.xpose.msra.mxu0 %v1156
    %2622 = vmatprep.subr.mxu0 0.0
    %2623 = vmatpush1.xpose.msra.mxu0 %v1151
    %2624 = vmatprep.subr.mxu0 0.0
    %2625 = vmatpush1.xpose.msra.mxu0 %v1146
    %2626 = vmatprep.subr.mxu0 0.0
    %2627 = vmatpush1.xpose.msra.mxu0 %v1141
    %2628 = vmatprep.subr.mxu0 0.0
    %2629 = vmatpush1.xpose.msra.mxu0 %v1136
    %2630 = vmatprep.subr.mxu0 0.0
    %2631 = vmatpush1.xpose.msra.mxu0 %v1131
    %2632 = vmatprep.subr.mxu0 0.0
    %2633 = vmatpush1.xpose.msra.mxu0 %v1126
    %2634 = vmatprep.subr.mxu0 0.0
    %2635 = vmatpush1.xpose.msra.mxu0 %v1121
    %2636 = vmatprep.subr.mxu0 0.0
    %2637 = vmatpush1.xpose.msra.mxu0 %v1116
    %2638 = vmatprep.subr.mxu0 0.0
    %2639 = vmatpush1.xpose.msra.mxu0 %v1111
    %2640 = vmatprep.subr.mxu0 0.0
    %2641 = vmatpush1.xpose.msra.mxu0 %v1106
    %2642 = vmatprep.subr.mxu0 0.0
    %2643 = vmatpush1.xpose.msra.mxu0 %v1101
    %2644 = vmatprep.subr.mxu0 0.0
    %2645 = vmatpush1.xpose.msra.mxu0 %v1096
    %2646 = vmatprep.subr.mxu0 0.0
    %2647 = vmatpush1.xpose.msra.mxu0 %v1091
    %2648 = vmatprep.subr.mxu0 0.0
    %2649 = vmatpush1.xpose.msra.mxu0 %v1086
    %2650 = vmatprep.subr.mxu0 0.0
    %2651 = vmatpush2.xpose.msra.mxu0 %v1241
    %2652 = vmatprep.subr.mxu0 0.0
    %2653 = vmatpush2.xpose.msra.mxu0 %v1236
    %2654 = vmatprep.subr.mxu0 0.0
    %2655 = vmatpush2.xpose.msra.mxu0 %v1231
    %2656 = vmatprep.subr.mxu0 0.0
    %2657 = vmatpush2.xpose.msra.mxu0 %v1226
    %2658 = vmatprep.subr.mxu0 0.0
    %2659 = vmatpush2.xpose.msra.mxu0 %v1221
    %2660 = vmatprep.subr.mxu0 0.0
    %2661 = vmatpush2.xpose.msra.mxu0 %v1216
    %2662 = vmatprep.subr.mxu0 0.0
    %2663 = vmatpush2.xpose.msra.mxu0 %v1211
    %2664 = vmatprep.subr.mxu0 0.0
    %2665 = vmatpush2.xpose.msra.mxu0 %v1206
    %2666 = vmatprep.subr.mxu0 0.0
    %2667 = vmatpush2.xpose.msra.mxu0 %v1201
    %2668 = vmatprep.subr.mxu0 0.0
    %2669 = vmatpush2.xpose.msra.mxu0 %v1196
    %2670 = vmatprep.subr.mxu0 0.0
    %2671 = vmatpush2.xpose.msra.mxu0 %v1191
    %2672 = vmatprep.subr.mxu0 0.0
    %2673 = vmatpush2.xpose.msra.mxu0 %v1186
    %2674 = vmatprep.subr.mxu0 0.0
    %2675 = vmatpush2.xpose.msra.mxu0 %v1181
    %2676 = vmatprep.subr.mxu0 0.0
    %2677 = vmatpush2.xpose.msra.mxu0 %v1176
    %2678 = vmatprep.subr.mxu0 0.0
    %2679 = vmatpush2.xpose.msra.mxu0 %v1171
    %2680 = vmatprep.subr.mxu0 0.0
    %2681 = vmatpush2.xpose.msra.mxu0 %v1166
    %2682 = vmatprep.mubr.f32.mxu0 0.0
    %2683 = vmatmul.mubr.f32.gmra.mxu0 %v2404
    %v2684 = vpop.f32.mrf.mxu0
    %v2685 = vadd.f32 0.0, %v2684
    %v2686 = vpop.f32.mrf.mxu0
    %v2687 = vadd.f32 0.0, %v2686
    %2688 = vdwg.mxu0
    %v2697 = vcombine.low %v2472, %v2474
    %v2698 = vcombine.low %v2543, %v2545
    %v2699 = vcombine.low %v2614, %v2616
    %v2700 = vcombine.low %v2685, %v2687
    %v2702 = vunpack.c.l.s4 1966171168
    %v2703 = vunpack.c.0.s8 %v2702
    %v2704 = vlaneseq
    %v2705 = vshrl.u32 %v2704, 7
    %v2706 = vsub.s32 %v2703, %v2705
    %v2707 = vrot.slane %v2697, %v2706
    %v2709 = vunpack.c.l.s4 1966171168
    %v2710 = vunpack.c.0.s8 %v2709
    %v2711 = vlaneseq
    %v2712 = vshrl.u32 %v2711, 7
    %v2713 = vsub.s32 %v2710, %v2712
    %v2714 = vrot.slane %v2698, %v2713
    %v2716 = vunpack.c.l.s4 1966171168
    %v2717 = vunpack.c.0.s8 %v2716
    %v2718 = vlaneseq
    %v2719 = vshrl.u32 %v2718, 7
    %v2720 = vsub.s32 %v2717, %v2719
    %v2721 = vrot.slane %v2699, %v2720
    %v2723 = vunpack.c.l.s4 1966171168
    %v2724 = vunpack.c.0.s8 %v2723
    %v2725 = vlaneseq
    %v2726 = vshrl.u32 %v2725, 7
    %v2727 = vsub.s32 %v2724, %v2726
    %v2728 = vrot.slane %v2700, %v2727
    %v2729 = vcombine.low %v2707, %v2714
    %v2730 = vcombine.low %v2721, %v2728
    %v2732 = vunpack.c.l.s4 1966171168
    %v2733 = vunpack.c.0.s8 %v2732
    %v2734 = vlaneseq
    %v2735 = vshrl.u32 %v2734, 7
    %v2736 = vsub.s32 %v2733, %v2735
    %v2737 = vrot.slane %v2729, %v2736
    %v2739 = vunpack.c.l.s4 1966171168
    %v2740 = vunpack.c.0.s8 %v2739
    %v2741 = vlaneseq
    %v2742 = vshrl.u32 %v2741, 7
    %v2743 = vsub.s32 %v2740, %v2742
    %v2744 = vrot.slane %v2730, %v2743
    %v2745 = vcombine.low %v2737, %v2744
    %2747 = vst [vmem:[#allocation4] sm:$0xff] %v2745
    // Predicated region
    $region18: #{tpu_custom_call.1} parent=1 // pred_check
      _
    $region19: #{tpu_custom_call.1} parent=1 // pred_check_branch
      %2749 = sbr.rel (0) target = $region21
    $region20: #{tpu_custom_call.1} parent=1 // pred_region
      %s2751 = ssub.s32 8192, 8192
      %2752 = vsyncadd [#allocation3], %s2751
      %s2753 = sshll.u32 [#allocation2], 4
      %s2754 = int_to_ptr.vmem [resolvable:$true] %s2753
      %2759 = dma.vmem_to_hbm [thread:$0]  %s2754, 8192, %s4, [#allocation3], 64, 64, 4
    $region21: #{tpu_custom_call.1} parent=1 // pred_fallthru
      _
    // Predicated region
    $region22: #{tpu_custom_call.1} parent=1 // pred_check
      _
    $region23: #{tpu_custom_call.1} parent=1 // pred_check_branch
      %2761 = sbr.rel (0) target = $region25
    $region24: #{tpu_custom_call.1} parent=1 // pred_region
      _
    $region25: #{tpu_custom_call.1} parent=1 // pred_fallthru
      _
    // Predicated region
    $region26: #{tpu_custom_call.1} parent=1 // pred_check
      _
    $region27: #{tpu_custom_call.1} parent=1 // pred_check_branch
      %2763 = sbr.rel (0) target = $region29
    $region28: #{tpu_custom_call.1} parent=1 // pred_region
      %s2765 = ssub.s32 128, 128
      %2766 = vsyncadd [#allocation5], %s2765
      %s2768 = sshll.u32 [#allocation4], 4
      %s2769 = int_to_ptr.vmem [resolvable:$true] %s2768
      %2771 = dma.vmem_to_hbm [thread:$0]  %s2769, 128, %s6, [#allocation5]
    $region29: #{tpu_custom_call.1} parent=1 // pred_fallthru
      _
    // Predicated region
    $region30: #{tpu_custom_call.1} parent=1 // pred_check
      _
    $region31: #{tpu_custom_call.1} parent=1 // pred_check_branch
      %2773 = sbr.rel (0) target = $region33
    $region32: #{tpu_custom_call.1} parent=1 // pred_region
      %2774 = dma.done [#allocation3], 8192
    $region33: #{tpu_custom_call.1} parent=1 // pred_fallthru
      _
    // Predicated region
    $region34: #{tpu_custom_call.1} parent=1 // pred_check
      _
    $region35: #{tpu_custom_call.1} parent=1 // pred_check_branch
      %2776 = sbr.rel (0) target = $region37
    $region36: #{tpu_custom_call.1} parent=1 // pred_region
      _
    $region37: #{tpu_custom_call.1} parent=1 // pred_fallthru
      _
    // Predicated region
    $region38: #{tpu_custom_call.1} parent=1 // pred_check
      _
    $region39: #{tpu_custom_call.1} parent=1 // pred_check_branch
      %2778 = sbr.rel (0) target = $region41
    $region40: #{tpu_custom_call.1} parent=1 // pred_region
      %2779 = dma.done [#allocation5], 128
    $region41: #{tpu_custom_call.1} parent=1 // pred_fallthru
      _
    %2780 = vsyncpa [#allocation3], 1
    %2781 = vsyncpa [#allocation5], 1

</llo_original>
